<compile_context>
chip_gen: v7x
topology: tpu7x:2x2x1
jax: 0.10.0
libtpu: 0.0.40
codegen_flags: <defaults>
</compile_context>

<pallas_src>
import functools
import math

import jax
import jax.numpy as jnp
from jax.experimental import pallas as pl
from jax.experimental.pallas import tpu as pltpu


# ----------------------------------------------------------------------------
# Pallas kernel: the FULL encoder stack (num_layers x (layer + outer residual))
# for one batch tile, activations resident in VMEM throughout.
# ----------------------------------------------------------------------------
def _encoder_stack_kernel(
    x_ref,                    # (bt, S, D)   activation block
    wqkv_ref, bqkv_ref,       # (D, 3D) bf16 (scale folded into Q cols), (1, 3D) f32
    wo_ref,                   # (D, D)  bf16
    w1_ref, b1_ref,           # (D, F)  bf16, (1, F) f32
    w2_ref,                   # (F, D)  bf16
    dvec_ref,                 # (6, D)  f32: rows = [bo, ln1g, ln1b, b2, ln2g, ln2b]
    out_ref,                  # (bt, S, D)
    *, nhead, num_layers,
):
    bt, S, D = x_ref.shape
    F = w1_ref.shape[1]
    dh = D // nhead
    R = bt * S                # rows fed to the big matmuls (batch folded into M)
    eps = 1e-5

    # Weights loaded once; loop-invariant across layers (deepcopy-clone semantics).
    wqkv = wqkv_ref[...]
    wo = wo_ref[...]
    w1 = w1_ref[...]
    w2 = w2_ref[...]

    # Hoist bias / LN-parameter broadcasts out of the layer loop.
    bqkv = jnp.broadcast_to(bqkv_ref[...], (R, 3 * D))
    b1 = jnp.broadcast_to(b1_ref[...], (R, F))
    dv = dvec_ref[...]
    bo = jnp.broadcast_to(dv[0:1], (R, D))
    ln1g = jnp.broadcast_to(dv[1:2], (R, D))
    ln1b = jnp.broadcast_to(dv[2:3], (R, D))
    b2 = jnp.broadcast_to(dv[3:4], (R, D))
    ln2g = jnp.broadcast_to(dv[4:5], (R, D))
    ln2b = jnp.broadcast_to(dv[5:6], (R, D))

    def layernorm(v, g, b):
        mu = jnp.mean(v, axis=-1, keepdims=True)
        c = v - mu
        var = jnp.mean(c * c, axis=-1, keepdims=True)
        return c * jax.lax.rsqrt(var + eps) * g + b

    def one_layer(x):         # x: (R, D) f32
        # ---- fused QKV projection, batch folded into M (single MXU matmul) ----
        qkv = jnp.dot(x.astype(jnp.bfloat16), wqkv,
                      preferred_element_type=jnp.float32) + bqkv
        q = qkv[:, 0 * D:1 * D]
        k = qkv[:, 1 * D:2 * D]
        v = qkv[:, 2 * D:3 * D]

        # ---- attention: batch x heads batched into ONE pair of batched dots ----
        qs, ks, vs = [], [], []
        for b in range(bt):                         # static, small
            rs = slice(b * S, (b + 1) * S)
            for h in range(nhead):
                cs = slice(h * dh, (h + 1) * dh)
                qs.append(q[rs, cs])
                ks.append(k[rs, cs])
                vs.append(v[rs, cs])
        qh = jnp.stack(qs, axis=0).astype(jnp.bfloat16)   # (G, S, dh), G = bt*nhead
        kh = jnp.stack(ks, axis=0).astype(jnp.bfloat16)
        vh = jnp.stack(vs, axis=0).astype(jnp.bfloat16)

        # Contraction handled by dot_general (no materialized kh.T transpose).
        s = jnp.einsum('gqd,gkd->gqk', qh, kh,
                       preferred_element_type=jnp.float32)        # (G, S, S)
        s = s - jnp.max(s, axis=-1, keepdims=True)
        p = jnp.exp(s)                                            # f32 softmax
        p = p / jnp.sum(p, axis=-1, keepdims=True)                # exact reciprocal
        ctx = jnp.einsum('gqk,gkd->gqd', p.astype(jnp.bfloat16), vh,
                         preferred_element_type=jnp.float32)      # (G, S, dh)

        # Re-assemble (R, D) context; W_o applied as ONE K=D matmul.
        rows = []
        for b in range(bt):
            rows.append(jnp.concatenate(
                [ctx[b * nhead + h] for h in range(nhead)], axis=-1))
        ctx_all = rows[0] if bt == 1 else jnp.concatenate(rows, axis=0)

        attn = jnp.dot(ctx_all.astype(jnp.bfloat16), wo,
                       preferred_element_type=jnp.float32) + bo

        # ---- post-LN residual blocks (elementwise math in f32) ----------------
        y = layernorm(x + attn, ln1g, ln1b)
        h1 = jnp.maximum(
            jnp.dot(y.astype(jnp.bfloat16), w1,
                    preferred_element_type=jnp.float32) + b1, 0.0)
        ffn = jnp.dot(h1.astype(jnp.bfloat16), w2,
                      preferred_element_type=jnp.float32) + b2
        return layernorm(y + ffn, ln2g, ln2b)

    x0 = x_ref[...].reshape(R, D).astype(jnp.float32)   # leading-dim merge: free

    def body(_, x):
        # Outer residual from TransformerEncoder.forward: src = src + layer(src)
        return x + one_layer(x)

    # Bounded unroll: full unroll only for shallow stacks.
    unroll = num_layers if num_layers <= 2 else 2
    xN = jax.lax.fori_loop(0, num_layers, body, x0, unroll=unroll)
    out_ref[...] = xN.reshape(bt, S, D).astype(out_ref.dtype)


# ----------------------------------------------------------------------------
# Wrapper: pack params (weights bf16, scale folded), batch-tile grid, one call.
# ----------------------------------------------------------------------------
def _pack_params(p, nhead):
    # Weights are in "x @ W" layout.  Real PyTorch (out, in) Linear weights /
    # packed in_proj_weight must be transposed / split before packing.
    D = p["wq"].shape[0]
    scale = 1.0 / math.sqrt(D // nhead)
    # Fold the 1/sqrt(dh) softmax scale into the Q projection at pack time.
    wqkv = jnp.concatenate([p["wq"] * scale, p["wk"], p["wv"]], axis=1)   # (D, 3D)
    bqkv = jnp.concatenate([p["bq"] * scale, p["bk"], p["bv"]], axis=1)   # (1, 3D)
    dvec = jnp.concatenate([p["bo"], p["ln1g"], p["ln1b"],
                            p["b2"], p["ln2g"], p["ln2b"]], axis=0)       # (6, D)
    return [wqkv.astype(jnp.bfloat16),
            bqkv.astype(jnp.float32),
            p["wo"].astype(jnp.bfloat16),
            p["w1"].astype(jnp.bfloat16),
            p["b1"].astype(jnp.float32),
            p["w2"].astype(jnp.bfloat16),
            dvec.astype(jnp.float32)]


def transformer_encoder_pallas(src, params, num_layers, *, nhead,
                               attention_mask=None, batch_tile=None):
    """Whole encoder stack (src = src + layer(src), num_layers times) in one kernel."""
    if attention_mask is not None:
        # TODO(synk): attention_mask path not implemented (reference forward
        # passes attention_mask=None); raise instead of being silently wrong.
        raise NotImplementedError("attention_mask is not supported")

    B, S, D = src.shape
    packed = _pack_params(params, nhead)

    # Batch tiling: fold batch elements into the matmul M dimension, but keep
    # >= 2 parallel grid steps when B allows (v7x has 2 TensorCores).
    if batch_tile is None:
        target_rows = 256
        bt = max(1, min(B, target_rows // max(S, 1)))
        if B > 1 and pl.cdiv(B, bt) < 2:
            bt = pl.cdiv(B, 2)
    else:
        bt = int(batch_tile)
    n_steps = pl.cdiv(B, bt)
    Bp = n_steps * bt
    src_in = src if Bp == B else jnp.concatenate(
        [src, jnp.zeros((Bp - B, S, D), src.dtype)], axis=0)

    def _const_spec(arr):
        zeros = (0,) * arr.ndim
        return pl.BlockSpec(arr.shape, lambda i, _z=zeros: _z)

    in_specs = [pl.BlockSpec((bt, S, D), lambda i: (i, 0, 0))]
    in_specs += [_const_spec(w) for w in packed]

    # VMEM budget derived from actual byte counts (capped for v7x's 64 MiB).
    def _nbytes(a):
        return int(a.size) * a.dtype.itemsize
    F = packed[3].shape[1]
    blk = bt * S * D * src.dtype.itemsize
    acts = bt * S * (3 * D + F + 6 * D) * 4 + 2 * bt * nhead * S * S * 4
    need = 4 * blk + 2 * sum(_nbytes(w) for w in packed) + 4 * acts
    vmem_limit = int(min(64 * 1024 * 1024, max(16 * 1024 * 1024, 2 * need)))

    out = pl.pallas_call(
        functools.partial(_encoder_stack_kernel, nhead=nhead,
                          num_layers=num_layers),
        out_shape=jax.ShapeDtypeStruct((Bp, S, D), src.dtype),
        grid=(n_steps,),
        in_specs=in_specs,
        out_specs=pl.BlockSpec((bt, S, D), lambda i: (i, 0, 0)),
        compiler_params=pltpu.CompilerParams(
            dimension_semantics=("parallel",),
            vmem_limit_bytes=vmem_limit),
    )(src_in, *packed)
    return out[:B]


# ----------------------------------------------------------------------------
# Pure-JAX reference (same math, f32) for the correctness check.
# ----------------------------------------------------------------------------
def _ref_layer(x, p, nhead):
    D = x.shape[-1]
    dh = D // nhead
    eps = 1e-5

    def ln(v, g, b):
        mu = v.mean(-1, keepdims=True)
        var = ((v - mu) ** 2).mean(-1, keepdims=True)
        return (v - mu) / jnp.sqrt(var + eps) * g + b

    q = x @ p["wq"] + p["bq"]
    k = x @ p["wk"] + p["bk"]
    v = x @ p["wv"] + p["bv"]
    parts = []
    for h in range(nhead):
        sl = slice(h * dh, (h + 1) * dh)
        s = (q[..., sl] @ jnp.swapaxes(k[..., sl], -1, -2)) / math.sqrt(dh)
        a = jax.nn.softmax(s, axis=-1)
        parts.append(a @ v[..., sl])
    ctx = jnp.concatenate(parts, axis=-1)
    attn_out = ctx @ p["wo"] + p["bo"]
    y = ln(x + attn_out, p["ln1g"], p["ln1b"])
    ffn = jnp.maximum(y @ p["w1"] + p["b1"], 0.0) @ p["w2"] + p["b2"]
    z = ln(y + ffn, p["ln2g"], p["ln2b"])
    return x + z


def _ref_encoder(src, p, num_layers, nhead):
    for _ in range(num_layers):
        src = _ref_layer(src, p, nhead)
    return src


# ----------------------------------------------------------------------------
def init_params(key, d_model, dim_ff):
    ks = jax.random.split(key, 8)
    sc = 1.0 / math.sqrt(d_model)
    return {
        "wq": jax.random.normal(ks[0], (d_model, d_model), jnp.float32) * sc,
        "wk": jax.random.normal(ks[1], (d_model, d_model), jnp.float32) * sc,
        "wv": jax.random.normal(ks[2], (d_model, d_model), jnp.float32) * sc,
        "wo": jax.random.normal(ks[3], (d_model, d_model), jnp.float32) * sc,
        "bq": jnp.zeros((1, d_model), jnp.float32),
        "bk": jnp.zeros((1, d_model), jnp.float32),
        "bv": jnp.zeros((1, d_model), jnp.float32),
        "bo": jax.random.normal(ks[4], (1, d_model), jnp.float32) * 0.01,
        "w1": jax.random.normal(ks[5], (d_model, dim_ff), jnp.float32) * sc,
        "b1": jax.random.normal(ks[6], (1, dim_ff), jnp.float32) * 0.01,
        "w2": jax.random.normal(ks[7], (dim_ff, d_model), jnp.float32)
              * (1.0 / math.sqrt(dim_ff)),
        "b2": jnp.zeros((1, d_model), jnp.float32),
        "ln1g": jnp.ones((1, d_model), jnp.float32),
        "ln1b": jnp.zeros((1, d_model), jnp.float32),
        "ln2g": jnp.ones((1, d_model), jnp.float32),
        "ln2b": jnp.zeros((1, d_model), jnp.float32),
    }


if __name__ == "__main__":
    B, S, D = 2, 8, 32
    NHEAD = 4
    DIM_FF = 64
    NUM_LAYERS = 2          # _get_clones(layer, 2) -> identical weights per layer

    key = jax.random.PRNGKey(0)
    k_x, k_p = jax.random.split(key)
    src = jax.random.normal(k_x, (B, S, D), jnp.float32)
    params = init_params(k_p, D, DIM_FF)   # shared by all layers (deepcopy semantics)

    out = transformer_encoder_pallas(src, params, NUM_LAYERS, nhead=NHEAD)
    out = jax.block_until_ready(out)

    ref = _ref_encoder(src, params, NUM_LAYERS, NHEAD)
    assert out.shape == (B, S, D)
    # Tolerance accounts for bf16 MXU operands (f32 accumulation) vs. f32 ref.
    assert jnp.allclose(out, ref, rtol=5e-2, atol=1e-1), "mismatch vs reference"

    print("KERNEL_OK")
</pallas_src>

<mosaic_0001>
module attributes {stable_mosaic.version = 11 : i64} {
  func.func @_encoder_stack_kernel(%arg0: i32, %arg1: memref<1x8x32xf32, #tpu.memory_space<vmem>>, %arg2: memref<32x96xbf16, #tpu.memory_space<vmem>>, %arg3: memref<1x96xf32, #tpu.memory_space<vmem>>, %arg4: memref<32x32xbf16, #tpu.memory_space<vmem>>, %arg5: memref<32x64xbf16, #tpu.memory_space<vmem>>, %arg6: memref<1x64xf32, #tpu.memory_space<vmem>>, %arg7: memref<64x32xbf16, #tpu.memory_space<vmem>>, %arg8: memref<6x32xf32, #tpu.memory_space<vmem>>, %arg9: memref<1x8x32xf32, #tpu.memory_space<vmem>>) attributes {dimension_semantics = [#tpu.dimension_semantics<parallel>], iteration_bounds = array<i64: 2>, scalar_prefetch = 0 : i64, scratch_operands = 0 : i64, tpu.core_type = #tpu.core_type<tc>, window_params = [{transform_indices = @transform_0, window_bounds = array<i64: 1, 8, 32>}, {pipeline_mode = #tpu.pipeline_mode<synchronous>, transform_indices = @transform_1, window_bounds = array<i64: 32, 96>}, {pipeline_mode = #tpu.pipeline_mode<synchronous>, transform_indices = @transform_2, window_bounds = array<i64: 1, 96>}, {pipeline_mode = #tpu.pipeline_mode<synchronous>, transform_indices = @transform_3, window_bounds = array<i64: 32, 32>}, {pipeline_mode = #tpu.pipeline_mode<synchronous>, transform_indices = @transform_4, window_bounds = array<i64: 32, 64>}, {pipeline_mode = #tpu.pipeline_mode<synchronous>, transform_indices = @transform_5, window_bounds = array<i64: 1, 64>}, {pipeline_mode = #tpu.pipeline_mode<synchronous>, transform_indices = @transform_6, window_bounds = array<i64: 64, 32>}, {pipeline_mode = #tpu.pipeline_mode<synchronous>, transform_indices = @transform_7, window_bounds = array<i64: 6, 32>}, {transform_indices = @transform_8, window_bounds = array<i64: 1, 8, 32>}]} {
    %c0 = arith.constant 0 : index
    %c0_0 = arith.constant 0 : index
    %0 = vector.load %arg2[%c0, %c0_0] : memref<32x96xbf16, #tpu.memory_space<vmem>>, vector<32x96xbf16>
    %c0_1 = arith.constant 0 : index
    %c0_2 = arith.constant 0 : index
    %1 = vector.load %arg4[%c0_1, %c0_2] : memref<32x32xbf16, #tpu.memory_space<vmem>>, vector<32x32xbf16>
    %c0_3 = arith.constant 0 : index
    %c0_4 = arith.constant 0 : index
    %2 = vector.load %arg5[%c0_3, %c0_4] : memref<32x64xbf16, #tpu.memory_space<vmem>>, vector<32x64xbf16>
    %c0_5 = arith.constant 0 : index
    %c0_6 = arith.constant 0 : index
    %3 = vector.load %arg7[%c0_5, %c0_6] : memref<64x32xbf16, #tpu.memory_space<vmem>>, vector<64x32xbf16>
    %c0_7 = arith.constant 0 : index
    %c0_8 = arith.constant 0 : index
    %4 = vector.load %arg3[%c0_7, %c0_8] : memref<1x96xf32, #tpu.memory_space<vmem>>, vector<1x96xf32>
    %5 = vector.shape_cast %4 : vector<1x96xf32> to vector<1x96xf32>
    %6 = vector.broadcast %5 : vector<1x96xf32> to vector<8x96xf32>
    %c0_9 = arith.constant 0 : index
    %c0_10 = arith.constant 0 : index
    %7 = vector.load %arg6[%c0_9, %c0_10] : memref<1x64xf32, #tpu.memory_space<vmem>>, vector<1x64xf32>
    %8 = vector.shape_cast %7 : vector<1x64xf32> to vector<1x64xf32>
    %9 = vector.broadcast %8 : vector<1x64xf32> to vector<8x64xf32>
    %c0_11 = arith.constant 0 : index
    %c0_12 = arith.constant 0 : index
    %10 = vector.load %arg8[%c0_11, %c0_12] : memref<6x32xf32, #tpu.memory_space<vmem>>, vector<6x32xf32>
    %11 = vector.extract_strided_slice %10 {offsets = [0, 0], sizes = [1, 32], strides = [1, 1]} : vector<6x32xf32> to vector<1x32xf32>
    %12 = vector.shape_cast %11 : vector<1x32xf32> to vector<1x32xf32>
    %13 = vector.broadcast %12 : vector<1x32xf32> to vector<8x32xf32>
    %14 = vector.extract_strided_slice %10 {offsets = [1, 0], sizes = [1, 32], strides = [1, 1]} : vector<6x32xf32> to vector<1x32xf32>
    %15 = vector.shape_cast %14 : vector<1x32xf32> to vector<1x32xf32>
    %16 = vector.broadcast %15 : vector<1x32xf32> to vector<8x32xf32>
    %17 = vector.extract_strided_slice %10 {offsets = [2, 0], sizes = [1, 32], strides = [1, 1]} : vector<6x32xf32> to vector<1x32xf32>
    %18 = vector.shape_cast %17 : vector<1x32xf32> to vector<1x32xf32>
    %19 = vector.broadcast %18 : vector<1x32xf32> to vector<8x32xf32>
    %20 = vector.extract_strided_slice %10 {offsets = [3, 0], sizes = [1, 32], strides = [1, 1]} : vector<6x32xf32> to vector<1x32xf32>
    %21 = vector.shape_cast %20 : vector<1x32xf32> to vector<1x32xf32>
    %22 = vector.broadcast %21 : vector<1x32xf32> to vector<8x32xf32>
    %23 = vector.extract_strided_slice %10 {offsets = [4, 0], sizes = [1, 32], strides = [1, 1]} : vector<6x32xf32> to vector<1x32xf32>
    %24 = vector.shape_cast %23 : vector<1x32xf32> to vector<1x32xf32>
    %25 = vector.broadcast %24 : vector<1x32xf32> to vector<8x32xf32>
    %26 = vector.extract_strided_slice %10 {offsets = [5, 0], sizes = [1, 32], strides = [1, 1]} : vector<6x32xf32> to vector<1x32xf32>
    %27 = vector.shape_cast %26 : vector<1x32xf32> to vector<1x32xf32>
    %28 = vector.broadcast %27 : vector<1x32xf32> to vector<8x32xf32>
    %c0_13 = arith.constant 0 : index
    %c0_14 = arith.constant 0 : index
    %c0_15 = arith.constant 0 : index
    %29 = vector.load %arg1[%c0_13, %c0_14, %c0_15] : memref<1x8x32xf32, #tpu.memory_space<vmem>>, vector<1x8x32xf32>
    %30 = vector.shape_cast %29 : vector<1x8x32xf32> to vector<8x32xf32>
    %c0_i32 = arith.constant 0 : i32
    %31 = arith.truncf %30 : vector<8x32xf32> to vector<8x32xbf16>
    %cst = arith.constant dense<0.000000e+00> : vector<8x96xf32>
    %32 = tpu.matmul %31, %0, %cst {dimension_numbers = #tpu.dot_dimension_numbers<[1], [0], [0], [1], [0, 0, 1, 1], [], []>} : vector<8x32xbf16>, vector<32x96xbf16>, vector<8x96xf32> -> vector<8x96xf32>
    %33 = arith.addf %32, %6 : vector<8x96xf32>
    %34 = vector.extract_strided_slice %33 {offsets = [0, 0], sizes = [8, 32], strides = [1, 1]} : vector<8x96xf32> to vector<8x32xf32>
    %35 = vector.extract_strided_slice %33 {offsets = [0, 32], sizes = [8, 32], strides = [1, 1]} : vector<8x96xf32> to vector<8x32xf32>
    %36 = vector.extract_strided_slice %33 {offsets = [0, 64], sizes = [8, 32], strides = [1, 1]} : vector<8x96xf32> to vector<8x32xf32>
    %37 = vector.extract_strided_slice %34 {offsets = [0, 0], sizes = [8, 8], strides = [1, 1]} : vector<8x32xf32> to vector<8x8xf32>
    %38 = vector.extract_strided_slice %35 {offsets = [0, 0], sizes = [8, 8], strides = [1, 1]} : vector<8x32xf32> to vector<8x8xf32>
    %39 = vector.extract_strided_slice %36 {offsets = [0, 0], sizes = [8, 8], strides = [1, 1]} : vector<8x32xf32> to vector<8x8xf32>
    %40 = vector.extract_strided_slice %34 {offsets = [0, 8], sizes = [8, 8], strides = [1, 1]} : vector<8x32xf32> to vector<8x8xf32>
    %41 = vector.extract_strided_slice %35 {offsets = [0, 8], sizes = [8, 8], strides = [1, 1]} : vector<8x32xf32> to vector<8x8xf32>
    %42 = vector.extract_strided_slice %36 {offsets = [0, 8], sizes = [8, 8], strides = [1, 1]} : vector<8x32xf32> to vector<8x8xf32>
    %43 = vector.extract_strided_slice %34 {offsets = [0, 16], sizes = [8, 8], strides = [1, 1]} : vector<8x32xf32> to vector<8x8xf32>
    %44 = vector.extract_strided_slice %35 {offsets = [0, 16], sizes = [8, 8], strides = [1, 1]} : vector<8x32xf32> to vector<8x8xf32>
    %45 = vector.extract_strided_slice %36 {offsets = [0, 16], sizes = [8, 8], strides = [1, 1]} : vector<8x32xf32> to vector<8x8xf32>
    %46 = vector.extract_strided_slice %34 {offsets = [0, 24], sizes = [8, 8], strides = [1, 1]} : vector<8x32xf32> to vector<8x8xf32>
    %47 = vector.extract_strided_slice %35 {offsets = [0, 24], sizes = [8, 8], strides = [1, 1]} : vector<8x32xf32> to vector<8x8xf32>
    %48 = vector.extract_strided_slice %36 {offsets = [0, 24], sizes = [8, 8], strides = [1, 1]} : vector<8x32xf32> to vector<8x8xf32>
    %49 = vector.shape_cast %37 : vector<8x8xf32> to vector<1x8x8xf32>
    %50 = vector.shape_cast %40 : vector<8x8xf32> to vector<1x8x8xf32>
    %51 = vector.shape_cast %43 : vector<8x8xf32> to vector<1x8x8xf32>
    %52 = vector.shape_cast %46 : vector<8x8xf32> to vector<1x8x8xf32>
    %53 = tpu.concatenate %49, %50, %51, %52 in 0 : vector<1x8x8xf32>, vector<1x8x8xf32>, vector<1x8x8xf32>, vector<1x8x8xf32> -> vector<4x8x8xf32>
    %54 = arith.truncf %53 : vector<4x8x8xf32> to vector<4x8x8xbf16>
    %55 = vector.shape_cast %38 : vector<8x8xf32> to vector<1x8x8xf32>
    %56 = vector.shape_cast %41 : vector<8x8xf32> to vector<1x8x8xf32>
    %57 = vector.shape_cast %44 : vector<8x8xf32> to vector<1x8x8xf32>
    %58 = vector.shape_cast %47 : vector<8x8xf32> to vector<1x8x8xf32>
    %59 = tpu.concatenate %55, %56, %57, %58 in 0 : vector<1x8x8xf32>, vector<1x8x8xf32>, vector<1x8x8xf32>, vector<1x8x8xf32> -> vector<4x8x8xf32>
    %60 = arith.truncf %59 : vector<4x8x8xf32> to vector<4x8x8xbf16>
    %61 = vector.shape_cast %39 : vector<8x8xf32> to vector<1x8x8xf32>
    %62 = vector.shape_cast %42 : vector<8x8xf32> to vector<1x8x8xf32>
    %63 = vector.shape_cast %45 : vector<8x8xf32> to vector<1x8x8xf32>
    %64 = vector.shape_cast %48 : vector<8x8xf32> to vector<1x8x8xf32>
    %65 = tpu.concatenate %61, %62, %63, %64 in 0 : vector<1x8x8xf32>, vector<1x8x8xf32>, vector<1x8x8xf32>, vector<1x8x8xf32> -> vector<4x8x8xf32>
    %66 = arith.truncf %65 : vector<4x8x8xf32> to vector<4x8x8xbf16>
    "tpu.trace_start"() <{level = 10 : i32, message = "gqd,gkd->gqk"}> : () -> ()
    %cst_16 = arith.constant dense<0.000000e+00> : vector<4x8x8xf32>
    %67 = tpu.matmul %54, %60, %cst_16 {dimension_numbers = #tpu.dot_dimension_numbers<[2], [2], [1], [1], [0, 0, 0, 1, 1, 1], [0], [0]>} : vector<4x8x8xbf16>, vector<4x8x8xbf16>, vector<4x8x8xf32> -> vector<4x8x8xf32>
    "tpu.trace_stop"() : () -> ()
    %cst_17 = arith.constant dense<0xFF800000> : vector<4x8xf32>
    %68 = vector.multi_reduction <maximumf>, %67, %cst_17 [2] : vector<4x8x8xf32> to vector<4x8xf32>
    %69 = vector.shape_cast %68 : vector<4x8xf32> to vector<4x8x1xf32>
    %70 = vector.broadcast %69 : vector<4x8x1xf32> to vector<4x8x8xf32>
    %71 = arith.subf %67, %70 : vector<4x8x8xf32>
    %72 = math.exp %71 : vector<4x8x8xf32>
    %cst_18 = arith.constant dense<0.000000e+00> : vector<4x8xf32>
    %73 = vector.multi_reduction <add>, %72, %cst_18 [2] : vector<4x8x8xf32> to vector<4x8xf32>
    %74 = vector.shape_cast %73 : vector<4x8xf32> to vector<4x8x1xf32>
    %75 = vector.broadcast %74 : vector<4x8x1xf32> to vector<4x8x8xf32>
    %76 = arith.divf %72, %75 : vector<4x8x8xf32>
    %77 = arith.truncf %76 : vector<4x8x8xf32> to vector<4x8x8xbf16>
    "tpu.trace_start"() <{level = 10 : i32, message = "gqk,gkd->gqd"}> : () -> ()
    %cst_19 = arith.constant dense<0.000000e+00> : vector<4x8x8xf32>
    %78 = tpu.matmul %77, %66, %cst_19 {dimension_numbers = #tpu.dot_dimension_numbers<[2], [1], [1], [2], [0, 0, 0, 1, 1, 2], [0], [0]>} : vector<4x8x8xbf16>, vector<4x8x8xbf16>, vector<4x8x8xf32> -> vector<4x8x8xf32>
    "tpu.trace_stop"() : () -> ()
    %79 = vector.extract_strided_slice %78 {offsets = [0, 0, 0], sizes = [1, 8, 8], strides = [1, 1, 1]} : vector<4x8x8xf32> to vector<1x8x8xf32>
    %80 = vector.shape_cast %79 : vector<1x8x8xf32> to vector<8x8xf32>
    %81 = vector.extract_strided_slice %78 {offsets = [1, 0, 0], sizes = [1, 8, 8], strides = [1, 1, 1]} : vector<4x8x8xf32> to vector<1x8x8xf32>
    %82 = vector.shape_cast %81 : vector<1x8x8xf32> to vector<8x8xf32>
    %83 = vector.extract_strided_slice %78 {offsets = [2, 0, 0], sizes = [1, 8, 8], strides = [1, 1, 1]} : vector<4x8x8xf32> to vector<1x8x8xf32>
    %84 = vector.shape_cast %83 : vector<1x8x8xf32> to vector<8x8xf32>
    %85 = vector.extract_strided_slice %78 {offsets = [3, 0, 0], sizes = [1, 8, 8], strides = [1, 1, 1]} : vector<4x8x8xf32> to vector<1x8x8xf32>
    %86 = vector.shape_cast %85 : vector<1x8x8xf32> to vector<8x8xf32>
    %87 = tpu.concatenate %80, %82, %84, %86 in 1 : vector<8x8xf32>, vector<8x8xf32>, vector<8x8xf32>, vector<8x8xf32> -> vector<8x32xf32>
    %88 = arith.truncf %87 : vector<8x32xf32> to vector<8x32xbf16>
    %cst_20 = arith.constant dense<0.000000e+00> : vector<8x32xf32>
    %89 = tpu.matmul %88, %1, %cst_20 {dimension_numbers = #tpu.dot_dimension_numbers<[1], [0], [0], [1], [0, 0, 1, 1], [], []>} : vector<8x32xbf16>, vector<32x32xbf16>, vector<8x32xf32> -> vector<8x32xf32>
    %90 = arith.addf %89, %13 : vector<8x32xf32>
    %91 = arith.addf %30, %90 : vector<8x32xf32>
    %cst_21 = arith.constant dense<0.000000e+00> : vector<8xf32>
    %92 = vector.multi_reduction <add>, %91, %cst_21 [1] : vector<8x32xf32> to vector<8xf32>
    %93 = vector.shape_cast %92 : vector<8xf32> to vector<8x1xf32>
    %cst_22 = arith.constant 3.200000e+01 : f32
    %94 = vector.broadcast %cst_22 : f32 to vector<8x1xf32>
    %95 = arith.divf %93, %94 : vector<8x1xf32>
    %96 = vector.broadcast %95 : vector<8x1xf32> to vector<8x32xf32>
    %97 = arith.subf %91, %96 : vector<8x32xf32>
    %98 = arith.mulf %97, %97 : vector<8x32xf32>
    %cst_23 = arith.constant dense<0.000000e+00> : vector<8xf32>
    %99 = vector.multi_reduction <add>, %98, %cst_23 [1] : vector<8x32xf32> to vector<8xf32>
    %100 = vector.shape_cast %99 : vector<8xf32> to vector<8x1xf32>
    %cst_24 = arith.constant 3.200000e+01 : f32
    %101 = vector.broadcast %cst_24 : f32 to vector<8x1xf32>
    %102 = arith.divf %100, %101 : vector<8x1xf32>
    %cst_25 = arith.constant 9.99999974E-6 : f32
    %103 = vector.broadcast %cst_25 : f32 to vector<8x1xf32>
    %104 = arith.addf %102, %103 : vector<8x1xf32>
    %105 = math.rsqrt %104 : vector<8x1xf32>
    %106 = vector.broadcast %105 : vector<8x1xf32> to vector<8x32xf32>
    %107 = arith.mulf %97, %106 : vector<8x32xf32>
    %108 = arith.mulf %107, %16 : vector<8x32xf32>
    %109 = arith.addf %108, %19 : vector<8x32xf32>
    %110 = arith.truncf %109 : vector<8x32xf32> to vector<8x32xbf16>
    %cst_26 = arith.constant dense<0.000000e+00> : vector<8x64xf32>
    %111 = tpu.matmul %110, %2, %cst_26 {dimension_numbers = #tpu.dot_dimension_numbers<[1], [0], [0], [1], [0, 0, 1, 1], [], []>} : vector<8x32xbf16>, vector<32x64xbf16>, vector<8x64xf32> -> vector<8x64xf32>
    %112 = arith.addf %111, %9 : vector<8x64xf32>
    %cst_27 = arith.constant 0.000000e+00 : f32
    %113 = vector.broadcast %cst_27 : f32 to vector<8x64xf32>
    %114 = arith.maximumf %112, %113 : vector<8x64xf32>
    %115 = arith.truncf %114 : vector<8x64xf32> to vector<8x64xbf16>
    %cst_28 = arith.constant dense<0.000000e+00> : vector<8x32xf32>
    %116 = tpu.matmul %115, %3, %cst_28 {dimension_numbers = #tpu.dot_dimension_numbers<[1], [0], [0], [1], [0, 0, 1, 1], [], []>} : vector<8x64xbf16>, vector<64x32xbf16>, vector<8x32xf32> -> vector<8x32xf32>
    %117 = arith.addf %116, %22 : vector<8x32xf32>
    %118 = arith.addf %109, %117 : vector<8x32xf32>
    %cst_29 = arith.constant dense<0.000000e+00> : vector<8xf32>
    %119 = vector.multi_reduction <add>, %118, %cst_29 [1] : vector<8x32xf32> to vector<8xf32>
    %120 = vector.shape_cast %119 : vector<8xf32> to vector<8x1xf32>
    %cst_30 = arith.constant 3.200000e+01 : f32
    %121 = vector.broadcast %cst_30 : f32 to vector<8x1xf32>
    %122 = arith.divf %120, %121 : vector<8x1xf32>
    %123 = vector.broadcast %122 : vector<8x1xf32> to vector<8x32xf32>
    %124 = arith.subf %118, %123 : vector<8x32xf32>
    %125 = arith.mulf %124, %124 : vector<8x32xf32>
    %cst_31 = arith.constant dense<0.000000e+00> : vector<8xf32>
    %126 = vector.multi_reduction <add>, %125, %cst_31 [1] : vector<8x32xf32> to vector<8xf32>
    %127 = vector.shape_cast %126 : vector<8xf32> to vector<8x1xf32>
    %cst_32 = arith.constant 3.200000e+01 : f32
    %128 = vector.broadcast %cst_32 : f32 to vector<8x1xf32>
    %129 = arith.divf %127, %128 : vector<8x1xf32>
    %cst_33 = arith.constant 9.99999974E-6 : f32
    %130 = vector.broadcast %cst_33 : f32 to vector<8x1xf32>
    %131 = arith.addf %129, %130 : vector<8x1xf32>
    %132 = math.rsqrt %131 : vector<8x1xf32>
    %133 = vector.broadcast %132 : vector<8x1xf32> to vector<8x32xf32>
    %134 = arith.mulf %124, %133 : vector<8x32xf32>
    %135 = arith.mulf %134, %25 : vector<8x32xf32>
    %136 = arith.addf %135, %28 : vector<8x32xf32>
    %137 = arith.addf %30, %136 : vector<8x32xf32>
    %c1_i32 = arith.constant 1 : i32
    %138 = arith.truncf %137 : vector<8x32xf32> to vector<8x32xbf16>
    %cst_34 = arith.constant dense<0.000000e+00> : vector<8x96xf32>
    %139 = tpu.matmul %138, %0, %cst_34 {dimension_numbers = #tpu.dot_dimension_numbers<[1], [0], [0], [1], [0, 0, 1, 1], [], []>} : vector<8x32xbf16>, vector<32x96xbf16>, vector<8x96xf32> -> vector<8x96xf32>
    %140 = arith.addf %139, %6 : vector<8x96xf32>
    %141 = vector.extract_strided_slice %140 {offsets = [0, 0], sizes = [8, 32], strides = [1, 1]} : vector<8x96xf32> to vector<8x32xf32>
    %142 = vector.extract_strided_slice %140 {offsets = [0, 32], sizes = [8, 32], strides = [1, 1]} : vector<8x96xf32> to vector<8x32xf32>
    %143 = vector.extract_strided_slice %140 {offsets = [0, 64], sizes = [8, 32], strides = [1, 1]} : vector<8x96xf32> to vector<8x32xf32>
    %144 = vector.extract_strided_slice %141 {offsets = [0, 0], sizes = [8, 8], strides = [1, 1]} : vector<8x32xf32> to vector<8x8xf32>
    %145 = vector.extract_strided_slice %142 {offsets = [0, 0], sizes = [8, 8], strides = [1, 1]} : vector<8x32xf32> to vector<8x8xf32>
    %146 = vector.extract_strided_slice %143 {offsets = [0, 0], sizes = [8, 8], strides = [1, 1]} : vector<8x32xf32> to vector<8x8xf32>
    %147 = vector.extract_strided_slice %141 {offsets = [0, 8], sizes = [8, 8], strides = [1, 1]} : vector<8x32xf32> to vector<8x8xf32>
    %148 = vector.extract_strided_slice %142 {offsets = [0, 8], sizes = [8, 8], strides = [1, 1]} : vector<8x32xf32> to vector<8x8xf32>
    %149 = vector.extract_strided_slice %143 {offsets = [0, 8], sizes = [8, 8], strides = [1, 1]} : vector<8x32xf32> to vector<8x8xf32>
    %150 = vector.extract_strided_slice %141 {offsets = [0, 16], sizes = [8, 8], strides = [1, 1]} : vector<8x32xf32> to vector<8x8xf32>
    %151 = vector.extract_strided_slice %142 {offsets = [0, 16], sizes = [8, 8], strides = [1, 1]} : vector<8x32xf32> to vector<8x8xf32>
    %152 = vector.extract_strided_slice %143 {offsets = [0, 16], sizes = [8, 8], strides = [1, 1]} : vector<8x32xf32> to vector<8x8xf32>
    %153 = vector.extract_strided_slice %141 {offsets = [0, 24], sizes = [8, 8], strides = [1, 1]} : vector<8x32xf32> to vector<8x8xf32>
    %154 = vector.extract_strided_slice %142 {offsets = [0, 24], sizes = [8, 8], strides = [1, 1]} : vector<8x32xf32> to vector<8x8xf32>
    %155 = vector.extract_strided_slice %143 {offsets = [0, 24], sizes = [8, 8], strides = [1, 1]} : vector<8x32xf32> to vector<8x8xf32>
    %156 = vector.shape_cast %144 : vector<8x8xf32> to vector<1x8x8xf32>
    %157 = vector.shape_cast %147 : vector<8x8xf32> to vector<1x8x8xf32>
    %158 = vector.shape_cast %150 : vector<8x8xf32> to vector<1x8x8xf32>
    %159 = vector.shape_cast %153 : vector<8x8xf32> to vector<1x8x8xf32>
    %160 = tpu.concatenate %156, %157, %158, %159 in 0 : vector<1x8x8xf32>, vector<1x8x8xf32>, vector<1x8x8xf32>, vector<1x8x8xf32> -> vector<4x8x8xf32>
    %161 = arith.truncf %160 : vector<4x8x8xf32> to vector<4x8x8xbf16>
    %162 = vector.shape_cast %145 : vector<8x8xf32> to vector<1x8x8xf32>
    %163 = vector.shape_cast %148 : vector<8x8xf32> to vector<1x8x8xf32>
    %164 = vector.shape_cast %151 : vector<8x8xf32> to vector<1x8x8xf32>
    %165 = vector.shape_cast %154 : vector<8x8xf32> to vector<1x8x8xf32>
    %166 = tpu.concatenate %162, %163, %164, %165 in 0 : vector<1x8x8xf32>, vector<1x8x8xf32>, vector<1x8x8xf32>, vector<1x8x8xf32> -> vector<4x8x8xf32>
    %167 = arith.truncf %166 : vector<4x8x8xf32> to vector<4x8x8xbf16>
    %168 = vector.shape_cast %146 : vector<8x8xf32> to vector<1x8x8xf32>
    %169 = vector.shape_cast %149 : vector<8x8xf32> to vector<1x8x8xf32>
    %170 = vector.shape_cast %152 : vector<8x8xf32> to vector<1x8x8xf32>
    %171 = vector.shape_cast %155 : vector<8x8xf32> to vector<1x8x8xf32>
    %172 = tpu.concatenate %168, %169, %170, %171 in 0 : vector<1x8x8xf32>, vector<1x8x8xf32>, vector<1x8x8xf32>, vector<1x8x8xf32> -> vector<4x8x8xf32>
    %173 = arith.truncf %172 : vector<4x8x8xf32> to vector<4x8x8xbf16>
    "tpu.trace_start"() <{level = 10 : i32, message = "gqd,gkd->gqk"}> : () -> ()
    %cst_35 = arith.constant dense<0.000000e+00> : vector<4x8x8xf32>
    %174 = tpu.matmul %161, %167, %cst_35 {dimension_numbers = #tpu.dot_dimension_numbers<[2], [2], [1], [1], [0, 0, 0, 1, 1, 1], [0], [0]>} : vector<4x8x8xbf16>, vector<4x8x8xbf16>, vector<4x8x8xf32> -> vector<4x8x8xf32>
    "tpu.trace_stop"() : () -> ()
    %cst_36 = arith.constant dense<0xFF800000> : vector<4x8xf32>
    %175 = vector.multi_reduction <maximumf>, %174, %cst_36 [2] : vector<4x8x8xf32> to vector<4x8xf32>
    %176 = vector.shape_cast %175 : vector<4x8xf32> to vector<4x8x1xf32>
    %177 = vector.broadcast %176 : vector<4x8x1xf32> to vector<4x8x8xf32>
    %178 = arith.subf %174, %177 : vector<4x8x8xf32>
    %179 = math.exp %178 : vector<4x8x8xf32>
    %cst_37 = arith.constant dense<0.000000e+00> : vector<4x8xf32>
    %180 = vector.multi_reduction <add>, %179, %cst_37 [2] : vector<4x8x8xf32> to vector<4x8xf32>
    %181 = vector.shape_cast %180 : vector<4x8xf32> to vector<4x8x1xf32>
    %182 = vector.broadcast %181 : vector<4x8x1xf32> to vector<4x8x8xf32>
    %183 = arith.divf %179, %182 : vector<4x8x8xf32>
    %184 = arith.truncf %183 : vector<4x8x8xf32> to vector<4x8x8xbf16>
    "tpu.trace_start"() <{level = 10 : i32, message = "gqk,gkd->gqd"}> : () -> ()
    %cst_38 = arith.constant dense<0.000000e+00> : vector<4x8x8xf32>
    %185 = tpu.matmul %184, %173, %cst_38 {dimension_numbers = #tpu.dot_dimension_numbers<[2], [1], [1], [2], [0, 0, 0, 1, 1, 2], [0], [0]>} : vector<4x8x8xbf16>, vector<4x8x8xbf16>, vector<4x8x8xf32> -> vector<4x8x8xf32>
    "tpu.trace_stop"() : () -> ()
    %186 = vector.extract_strided_slice %185 {offsets = [0, 0, 0], sizes = [1, 8, 8], strides = [1, 1, 1]} : vector<4x8x8xf32> to vector<1x8x8xf32>
    %187 = vector.shape_cast %186 : vector<1x8x8xf32> to vector<8x8xf32>
    %188 = vector.extract_strided_slice %185 {offsets = [1, 0, 0], sizes = [1, 8, 8], strides = [1, 1, 1]} : vector<4x8x8xf32> to vector<1x8x8xf32>
    %189 = vector.shape_cast %188 : vector<1x8x8xf32> to vector<8x8xf32>
    %190 = vector.extract_strided_slice %185 {offsets = [2, 0, 0], sizes = [1, 8, 8], strides = [1, 1, 1]} : vector<4x8x8xf32> to vector<1x8x8xf32>
    %191 = vector.shape_cast %190 : vector<1x8x8xf32> to vector<8x8xf32>
    %192 = vector.extract_strided_slice %185 {offsets = [3, 0, 0], sizes = [1, 8, 8], strides = [1, 1, 1]} : vector<4x8x8xf32> to vector<1x8x8xf32>
    %193 = vector.shape_cast %192 : vector<1x8x8xf32> to vector<8x8xf32>
    %194 = tpu.concatenate %187, %189, %191, %193 in 1 : vector<8x8xf32>, vector<8x8xf32>, vector<8x8xf32>, vector<8x8xf32> -> vector<8x32xf32>
    %195 = arith.truncf %194 : vector<8x32xf32> to vector<8x32xbf16>
    %cst_39 = arith.constant dense<0.000000e+00> : vector<8x32xf32>
    %196 = tpu.matmul %195, %1, %cst_39 {dimension_numbers = #tpu.dot_dimension_numbers<[1], [0], [0], [1], [0, 0, 1, 1], [], []>} : vector<8x32xbf16>, vector<32x32xbf16>, vector<8x32xf32> -> vector<8x32xf32>
    %197 = arith.addf %196, %13 : vector<8x32xf32>
    %198 = arith.addf %137, %197 : vector<8x32xf32>
    %cst_40 = arith.constant dense<0.000000e+00> : vector<8xf32>
    %199 = vector.multi_reduction <add>, %198, %cst_40 [1] : vector<8x32xf32> to vector<8xf32>
    %200 = vector.shape_cast %199 : vector<8xf32> to vector<8x1xf32>
    %cst_41 = arith.constant 3.200000e+01 : f32
    %201 = vector.broadcast %cst_41 : f32 to vector<8x1xf32>
    %202 = arith.divf %200, %201 : vector<8x1xf32>
    %203 = vector.broadcast %202 : vector<8x1xf32> to vector<8x32xf32>
    %204 = arith.subf %198, %203 : vector<8x32xf32>
    %205 = arith.mulf %204, %204 : vector<8x32xf32>
    %cst_42 = arith.constant dense<0.000000e+00> : vector<8xf32>
    %206 = vector.multi_reduction <add>, %205, %cst_42 [1] : vector<8x32xf32> to vector<8xf32>
    %207 = vector.shape_cast %206 : vector<8xf32> to vector<8x1xf32>
    %cst_43 = arith.constant 3.200000e+01 : f32
    %208 = vector.broadcast %cst_43 : f32 to vector<8x1xf32>
    %209 = arith.divf %207, %208 : vector<8x1xf32>
    %cst_44 = arith.constant 9.99999974E-6 : f32
    %210 = vector.broadcast %cst_44 : f32 to vector<8x1xf32>
    %211 = arith.addf %209, %210 : vector<8x1xf32>
    %212 = math.rsqrt %211 : vector<8x1xf32>
    %213 = vector.broadcast %212 : vector<8x1xf32> to vector<8x32xf32>
    %214 = arith.mulf %204, %213 : vector<8x32xf32>
    %215 = arith.mulf %214, %16 : vector<8x32xf32>
    %216 = arith.addf %215, %19 : vector<8x32xf32>
    %217 = arith.truncf %216 : vector<8x32xf32> to vector<8x32xbf16>
    %cst_45 = arith.constant dense<0.000000e+00> : vector<8x64xf32>
    %218 = tpu.matmul %217, %2, %cst_45 {dimension_numbers = #tpu.dot_dimension_numbers<[1], [0], [0], [1], [0, 0, 1, 1], [], []>} : vector<8x32xbf16>, vector<32x64xbf16>, vector<8x64xf32> -> vector<8x64xf32>
    %219 = arith.addf %218, %9 : vector<8x64xf32>
    %cst_46 = arith.constant 0.000000e+00 : f32
    %220 = vector.broadcast %cst_46 : f32 to vector<8x64xf32>
    %221 = arith.maximumf %219, %220 : vector<8x64xf32>
    %222 = arith.truncf %221 : vector<8x64xf32> to vector<8x64xbf16>
    %cst_47 = arith.constant dense<0.000000e+00> : vector<8x32xf32>
    %223 = tpu.matmul %222, %3, %cst_47 {dimension_numbers = #tpu.dot_dimension_numbers<[1], [0], [0], [1], [0, 0, 1, 1], [], []>} : vector<8x64xbf16>, vector<64x32xbf16>, vector<8x32xf32> -> vector<8x32xf32>
    %224 = arith.addf %223, %22 : vector<8x32xf32>
    %225 = arith.addf %216, %224 : vector<8x32xf32>
    %cst_48 = arith.constant dense<0.000000e+00> : vector<8xf32>
    %226 = vector.multi_reduction <add>, %225, %cst_48 [1] : vector<8x32xf32> to vector<8xf32>
    %227 = vector.shape_cast %226 : vector<8xf32> to vector<8x1xf32>
    %cst_49 = arith.constant 3.200000e+01 : f32
    %228 = vector.broadcast %cst_49 : f32 to vector<8x1xf32>
    %229 = arith.divf %227, %228 : vector<8x1xf32>
    %230 = vector.broadcast %229 : vector<8x1xf32> to vector<8x32xf32>
    %231 = arith.subf %225, %230 : vector<8x32xf32>
    %232 = arith.mulf %231, %231 : vector<8x32xf32>
    %cst_50 = arith.constant dense<0.000000e+00> : vector<8xf32>
    %233 = vector.multi_reduction <add>, %232, %cst_50 [1] : vector<8x32xf32> to vector<8xf32>
    %234 = vector.shape_cast %233 : vector<8xf32> to vector<8x1xf32>
    %cst_51 = arith.constant 3.200000e+01 : f32
    %235 = vector.broadcast %cst_51 : f32 to vector<8x1xf32>
    %236 = arith.divf %234, %235 : vector<8x1xf32>
    %cst_52 = arith.constant 9.99999974E-6 : f32
    %237 = vector.broadcast %cst_52 : f32 to vector<8x1xf32>
    %238 = arith.addf %236, %237 : vector<8x1xf32>
    %239 = math.rsqrt %238 : vector<8x1xf32>
    %240 = vector.broadcast %239 : vector<8x1xf32> to vector<8x32xf32>
    %241 = arith.mulf %231, %240 : vector<8x32xf32>
    %242 = arith.mulf %241, %25 : vector<8x32xf32>
    %243 = arith.addf %242, %28 : vector<8x32xf32>
    %244 = arith.addf %137, %243 : vector<8x32xf32>
    %245 = vector.shape_cast %244 : vector<8x32xf32> to vector<1x8x32xf32>
    %c0_53 = arith.constant 0 : index
    %c0_54 = arith.constant 0 : index
    %c0_55 = arith.constant 0 : index
    %246 = vector.load %arg9[%c0_53, %c0_54, %c0_55] : memref<1x8x32xf32, #tpu.memory_space<vmem>>, vector<1x8x32xf32>
    tpu.vector_store %arg9[%c0_53, %c0_54, %c0_55], %245 {strides = array<i32>} : memref<1x8x32xf32, #tpu.memory_space<vmem>>, vector<1x8x32xf32>,
    return
  }
  func.func @transform_0(%arg0: i32) -> (i32, i32, i32) {
    %c0_i32 = arith.constant 0 : i32
    %c0_i32_0 = arith.constant 0 : i32
    %c0_i32_1 = arith.constant 0 : i32
    return %arg0, %c0_i32, %c0_i32_0 : i32, i32, i32
  }
  func.func @transform_1(%arg0: i32) -> (i32, i32) {
    %c0_i32 = arith.constant 0 : i32
    %c0_i32_0 = arith.constant 0 : i32
    %c0_i32_1 = arith.constant 0 : i32
    return %c0_i32, %c0_i32_0 : i32, i32
  }
  func.func @transform_2(%arg0: i32) -> (i32, i32) {
    %c0_i32 = arith.constant 0 : i32
    %c0_i32_0 = arith.constant 0 : i32
    %c0_i32_1 = arith.constant 0 : i32
    return %c0_i32, %c0_i32_0 : i32, i32
  }
  func.func @transform_3(%arg0: i32) -> (i32, i32) {
    %c0_i32 = arith.constant 0 : i32
    %c0_i32_0 = arith.constant 0 : i32
    %c0_i32_1 = arith.constant 0 : i32
    return %c0_i32, %c0_i32_0 : i32, i32
  }
  func.func @transform_4(%arg0: i32) -> (i32, i32) {
    %c0_i32 = arith.constant 0 : i32
    %c0_i32_0 = arith.constant 0 : i32
    %c0_i32_1 = arith.constant 0 : i32
    return %c0_i32, %c0_i32_0 : i32, i32
  }
  func.func @transform_5(%arg0: i32) -> (i32, i32) {
    %c0_i32 = arith.constant 0 : i32
    %c0_i32_0 = arith.constant 0 : i32
    %c0_i32_1 = arith.constant 0 : i32
    return %c0_i32, %c0_i32_0 : i32, i32
  }
  func.func @transform_6(%arg0: i32) -> (i32, i32) {
    %c0_i32 = arith.constant 0 : i32
    %c0_i32_0 = arith.constant 0 : i32
    %c0_i32_1 = arith.constant 0 : i32
    return %c0_i32, %c0_i32_0 : i32, i32
  }
  func.func @transform_7(%arg0: i32) -> (i32, i32) {
    %c0_i32 = arith.constant 0 : i32
    %c0_i32_0 = arith.constant 0 : i32
    %c0_i32_1 = arith.constant 0 : i32
    return %c0_i32, %c0_i32_0 : i32, i32
  }
  func.func @transform_8(%arg0: i32) -> (i32, i32, i32) {
    %c0_i32 = arith.constant 0 : i32
    %c0_i32_0 = arith.constant 0 : i32
    %c0_i32_1 = arith.constant 0 : i32
    return %arg0, %c0_i32, %c0_i32_0 : i32, i32, i32
  }
}

</mosaic_0001>

<llo_original>
// kernel: tpu_custom_call.1
$region0: #{tpu_custom_call.1}
  #allocation0 [shape = 'u32[]', space=smem, size = 0x4, offset = 0x4, fixed_abs, tag = 'smem constant byte address 0x4 - core index']
  #allocation1 [shape = 'u32[144,128]{1,0:T(1,128)}', space=vmem, size = 0x12000, scoped, tag = 'internal scratch']
  %s0 = inlined_call_operand.vmem [shape: f32[2,8,32], index: 0, kind: input, shape index: {}]
  %s1 = inlined_call_operand.vmem [shape: bf16[32,96], index: 1, kind: input, shape index: {}]
  %s2 = inlined_call_operand.vmem [shape: f32[1,96], index: 2, kind: input, shape index: {}]
  %s3 = inlined_call_operand.vmem [shape: bf16[32,32], index: 3, kind: input, shape index: {}]
  %s4 = inlined_call_operand.hbm [shape: bf16[32,64], index: 4, kind: input, shape index: {}]
  %s5 = inlined_call_operand.vmem [shape: f32[1,64], index: 5, kind: input, shape index: {}]
  %s6 = inlined_call_operand.vmem [shape: bf16[64,32], index: 6, kind: input, shape index: {}]
  %s7 = inlined_call_operand.vmem [shape: f32[6,32], index: 7, kind: input, shape index: {}]
  %s8 = inlined_call_operand.hbm [shape: f32[2,8,32], index: 8, kind: output, shape index: {}]
  %s9 = sld [smem:[#allocation0]]
  $region69: #{tpu_custom_call.1} parent=0
    _
  %s11 = ssub.s32 1, %s9
  %s12 = scalar_select 0, %s11, %s9
  $region1: #{tpu_custom_call.1} parent=0
    #allocation2 [shape = 'u8[8192]{0}', space=vmem, size = 0x2000, scoped, tag = 'input window, operand 4, single buffered']
    #allocation3 [shape = 's32[2]{0}', space=sflag, size = 0x8, scoped, tag = 'scoped memory for tpu_custom_call.1']
    #allocation4 [shape = 's32[2]{0}', space=sflag, size = 0x8, scoped, tag = 'scoped memory for tpu_custom_call.1']
    #allocation5 [shape = 'u8[8192]{0}', space=vmem, size = 0x2000, scoped, tag = 'output window, operand 0']
    %13 = vsyncpa [#allocation3], 0
    %14 = vsyncpa [#allocation4], 0
    %s15 = scalar_lea.sflag [#allocation4], 1
    %16 = vsyncpa %s15, 0
    loop: start=0, step=1, limit=4
    $region2: #{tpu_custom_call.1} parent=1 // loop_pre_header
      _
    $region3: #{tpu_custom_call.1} parent=1 // loop_header
      %s18 = sphi 0, %s22
      %p19 = scmp.ge.s32.totalorder %s18, 4
      %s28 = sphi 0, %s30
      %s31 = sphi 0, %s28
      %s32 = sphi 0, %s31
      %s48 = sphi 0, %s32
      %s52 = sphi 0, %s52
      %s54 = sphi 0, %s52
      %s55 = sphi 0, %s54
      %s69 = sphi 0, %s55
      %s73 = sphi 0, %s73
      %s75 = sphi 0, %s73
      %s76 = sphi 0, %s75
      %s90 = sphi 0, %s76
      %s94 = sphi 0, %s94
      %s96 = sphi 0, %s94
      %s97 = sphi 0, %s96
      %s111 = sphi 0, %s97
      %s115 = sphi 0, %s115
      %s117 = sphi 0, %s115
      %s118 = sphi 0, %s117
      %s132 = sphi 0, %s118
      %s136 = sphi 0, %s136
      %s138 = sphi 0, %s136
      %s139 = sphi 0, %s138
      %s153 = sphi 0, %s139
      %s157 = sphi 0, %s157
      %s159 = sphi 0, %s157
      %s160 = sphi 0, %s159
      %s174 = sphi 0, %s160
      %s178 = sphi 0, %s178
      %s180 = sphi 0, %s178
      %s181 = sphi 0, %s180
      %s195 = sphi 0, %s181
      %s201 = sphi 0, %s203
      %s204 = sphi 0, %s201
      %s205 = sphi 0, %s204
      %s221 = sphi 0, %s205
    $region4: #{tpu_custom_call.1} parent=1 // loop_header_branch
      %21 = sbr.rel (%p19) target = $region8
    $region5: #{tpu_custom_call.1} parent=1 // loop_body
      %s23 = ssub.s32 %s18, 1
      %s24 = ssub.s32 %s18, 2
      %s25 = sadd.s32 %s18, 1
      %s26 = ssub.s32 %s18, %s25
      %p27 = scmp.eq.s32.totalorder %s26, 0
      %s29 = sadd.s32 %s28, 1
      %s30 = scalar_select %p27, %s28, %s29
      %p33 = pneg %p27
      %p34 = scmp.eq.s32.totalorder %s18, 1
      %p35 = por %p33, %p34
      %p36 = scmp.ne.s32.totalorder %s28, %s31
      %p37 = scmp.eq.s32.totalorder %s18, 0
      %p38 = por %p36, %p37
      %p39 = scmp.ne.s32.totalorder %s28, %s31
      %p40 = scmp.eq.s32.totalorder %s23, 1
      %p41 = por %p39, %p40
      %p42 = scmp.ne.s32.totalorder %s31, %s32
      %p43 = scmp.eq.s32.totalorder %s23, 0
      %p44 = por %p42, %p43
      %p45 = scmp.ne.s32.totalorder %s31, %s32
      %p46 = scmp.eq.s32.totalorder %s24, 1
      %p47 = por %p45, %p46
      %p49 = scmp.ne.s32.totalorder %s32, %s48
      %p50 = scmp.eq.s32.totalorder %s24, 0
      %p51 = por %p49, %p50
      %s53 = sadd.s32 %s52, 1
      %p56 = scmp.eq.s32.totalorder %s18, 1
      %p57 = scmp.ne.s32.totalorder %s52, %s54
      %p58 = scmp.eq.s32.totalorder %s18, 0
      %p59 = por %p57, %p58
      %p60 = scmp.ne.s32.totalorder %s52, %s54
      %p61 = scmp.eq.s32.totalorder %s23, 1
      %p62 = por %p60, %p61
      %p63 = scmp.ne.s32.totalorder %s54, %s55
      %p64 = scmp.eq.s32.totalorder %s23, 0
      %p65 = por %p63, %p64
      %p66 = scmp.ne.s32.totalorder %s54, %s55
      %p67 = scmp.eq.s32.totalorder %s24, 1
      %p68 = por %p66, %p67
      %p70 = scmp.ne.s32.totalorder %s55, %s69
      %p71 = scmp.eq.s32.totalorder %s24, 0
      %p72 = por %p70, %p71
      %s74 = sadd.s32 %s73, 1
      %p77 = scmp.eq.s32.totalorder %s18, 1
      %p78 = scmp.ne.s32.totalorder %s73, %s75
      %p79 = scmp.eq.s32.totalorder %s18, 0
      %p80 = por %p78, %p79
      %p81 = scmp.ne.s32.totalorder %s73, %s75
      %p82 = scmp.eq.s32.totalorder %s23, 1
      %p83 = por %p81, %p82
      %p84 = scmp.ne.s32.totalorder %s75, %s76
      %p85 = scmp.eq.s32.totalorder %s23, 0
      %p86 = por %p84, %p85
      %p87 = scmp.ne.s32.totalorder %s75, %s76
      %p88 = scmp.eq.s32.totalorder %s24, 1
      %p89 = por %p87, %p88
      %p91 = scmp.ne.s32.totalorder %s76, %s90
      %p92 = scmp.eq.s32.totalorder %s24, 0
      %p93 = por %p91, %p92
      %s95 = sadd.s32 %s94, 1
      %p98 = scmp.eq.s32.totalorder %s18, 1
      %p99 = scmp.ne.s32.totalorder %s94, %s96
      %p100 = scmp.eq.s32.totalorder %s18, 0
      %p101 = por %p99, %p100
      %p102 = scmp.ne.s32.totalorder %s94, %s96
      %p103 = scmp.eq.s32.totalorder %s23, 1
      %p104 = por %p102, %p103
      %p105 = scmp.ne.s32.totalorder %s96, %s97
      %p106 = scmp.eq.s32.totalorder %s23, 0
      %p107 = por %p105, %p106
      %p108 = scmp.ne.s32.totalorder %s96, %s97
      %p109 = scmp.eq.s32.totalorder %s24, 1
      %p110 = por %p108, %p109
      %p112 = scmp.ne.s32.totalorder %s97, %s111
      %p113 = scmp.eq.s32.totalorder %s24, 0
      %p114 = por %p112, %p113
      %s116 = sadd.s32 %s115, 1
      %p119 = scmp.eq.s32.totalorder %s18, 1
      %p120 = scmp.ne.s32.totalorder %s115, %s117
      %p121 = scmp.eq.s32.totalorder %s18, 0
      %p122 = por %p120, %p121
      %p123 = scmp.ne.s32.totalorder %s115, %s117
      %p124 = scmp.eq.s32.totalorder %s23, 1
      %p125 = por %p123, %p124
      %p126 = scmp.ne.s32.totalorder %s117, %s118
      %p127 = scmp.eq.s32.totalorder %s23, 0
      %p128 = por %p126, %p127
      %p129 = scmp.ne.s32.totalorder %s117, %s118
      %p130 = scmp.eq.s32.totalorder %s24, 1
      %p131 = por %p129, %p130
      %p133 = scmp.ne.s32.totalorder %s118, %s132
      %p134 = scmp.eq.s32.totalorder %s24, 0
      %p135 = por %p133, %p134
      %s137 = sadd.s32 %s136, 1
      %p140 = scmp.eq.s32.totalorder %s18, 1
      %p141 = scmp.ne.s32.totalorder %s136, %s138
      %p142 = scmp.eq.s32.totalorder %s18, 0
      %p143 = por %p141, %p142
      %p144 = scmp.ne.s32.totalorder %s136, %s138
      %p145 = scmp.eq.s32.totalorder %s23, 1
      %p146 = por %p144, %p145
      %p147 = scmp.ne.s32.totalorder %s138, %s139
      %p148 = scmp.eq.s32.totalorder %s23, 0
      %p149 = por %p147, %p148
      %p150 = scmp.ne.s32.totalorder %s138, %s139
      %p151 = scmp.eq.s32.totalorder %s24, 1
      %p152 = por %p150, %p151
      %p154 = scmp.ne.s32.totalorder %s139, %s153
      %p155 = scmp.eq.s32.totalorder %s24, 0
      %p156 = por %p154, %p155
      %s158 = sadd.s32 %s157, 1
      %p161 = scmp.eq.s32.totalorder %s18, 1
      %p162 = scmp.ne.s32.totalorder %s157, %s159
      %p163 = scmp.eq.s32.totalorder %s18, 0
      %p164 = por %p162, %p163
      %p165 = scmp.ne.s32.totalorder %s157, %s159
      %p166 = scmp.eq.s32.totalorder %s23, 1
      %p167 = por %p165, %p166
      %p168 = scmp.ne.s32.totalorder %s159, %s160
      %p169 = scmp.eq.s32.totalorder %s23, 0
      %p170 = por %p168, %p169
      %p171 = scmp.ne.s32.totalorder %s159, %s160
      %p172 = scmp.eq.s32.totalorder %s24, 1
      %p173 = por %p171, %p172
      %p175 = scmp.ne.s32.totalorder %s160, %s174
      %p176 = scmp.eq.s32.totalorder %s24, 0
      %p177 = por %p175, %p176
      %s179 = sadd.s32 %s178, 1
      %p182 = scmp.eq.s32.totalorder %s18, 1
      %p183 = scmp.ne.s32.totalorder %s178, %s180
      %p184 = scmp.eq.s32.totalorder %s18, 0
      %p185 = por %p183, %p184
      %p186 = scmp.ne.s32.totalorder %s178, %s180
      %p187 = scmp.eq.s32.totalorder %s23, 1
      %p188 = por %p186, %p187
      %p189 = scmp.ne.s32.totalorder %s180, %s181
      %p190 = scmp.eq.s32.totalorder %s23, 0
      %p191 = por %p189, %p190
      %p192 = scmp.ne.s32.totalorder %s180, %s181
      %p193 = scmp.eq.s32.totalorder %s24, 1
      %p194 = por %p192, %p193
      %p196 = scmp.ne.s32.totalorder %s181, %s195
      %p197 = scmp.eq.s32.totalorder %s24, 0
      %p198 = por %p196, %p197
      %s199 = ssub.s32 %s18, %s25
      %p200 = scmp.eq.s32.totalorder %s199, 0
      %s202 = sadd.s32 %s201, 1
      %s203 = scalar_select %p200, %s201, %s202
      %p206 = pneg %p200
      %p207 = scmp.eq.s32.totalorder %s18, 1
      %p208 = por %p206, %p207
      %p209 = scmp.ne.s32.totalorder %s201, %s204
      %p210 = scmp.eq.s32.totalorder %s18, 0
      %p211 = por %p209, %p210
      %p212 = scmp.ne.s32.totalorder %s201, %s204
      %p213 = scmp.eq.s32.totalorder %s23, 1
      %p214 = por %p212, %p213
      %p215 = scmp.ne.s32.totalorder %s204, %s205
      %p216 = scmp.eq.s32.totalorder %s23, 0
      %p217 = por %p215, %p216
      %p218 = scmp.ne.s32.totalorder %s204, %s205
      %p219 = scmp.eq.s32.totalorder %s24, 1
      %p220 = por %p218, %p219
      %p222 = scmp.ne.s32.totalorder %s205, %s221
      %p223 = scmp.eq.s32.totalorder %s24, 0
      %p224 = por %p222, %p223
      %p225 = scmp.le.s32.totalorder 1, %s18
      %p226 = scmp.lt.s32.totalorder %s18, 3
      %p227 = pnand %p225, %p226
      %p228 = pneg %p227
      // Predicated region
      $region9: #{tpu_custom_call.1} parent=5 // pred_check
        _
      $region10: #{tpu_custom_call.1} parent=5 // pred_check_branch
        %230 = sbr.rel (%p227) target = $region12
      $region11: #{tpu_custom_call.1} parent=5 // pred_region
        %s231 = ssub.s32 %s18, 1
        // Predicated region
        $region13: #{tpu_custom_call.1} parent=11 // pred_check
          %p232 = pneg %p65
        $region14: #{tpu_custom_call.1} parent=11 // pred_check_branch
          %234 = sbr.rel (%p232) target = $region16
        $region15: #{tpu_custom_call.1} parent=11 // pred_region
          _
        $region16: #{tpu_custom_call.1} parent=11 // pred_fallthru
          _
        // Predicated region
        $region17: #{tpu_custom_call.1} parent=11 // pred_check
          %p235 = pneg %p86
        $region18: #{tpu_custom_call.1} parent=11 // pred_check_branch
          %237 = sbr.rel (%p235) target = $region20
        $region19: #{tpu_custom_call.1} parent=11 // pred_region
          _
        $region20: #{tpu_custom_call.1} parent=11 // pred_fallthru
          _
        // Predicated region
        $region21: #{tpu_custom_call.1} parent=11 // pred_check
          %p238 = pneg %p107
        $region22: #{tpu_custom_call.1} parent=11 // pred_check_branch
          %240 = sbr.rel (%p238) target = $region24
        $region23: #{tpu_custom_call.1} parent=11 // pred_region
          _
        $region24: #{tpu_custom_call.1} parent=11 // pred_fallthru
          _
        // Predicated region
        $region25: #{tpu_custom_call.1} parent=11 // pred_check
          %p241 = pneg %p128
        $region26: #{tpu_custom_call.1} parent=11 // pred_check_branch
          %243 = sbr.rel (%p241) target = $region28
        $region27: #{tpu_custom_call.1} parent=11 // pred_region
          %s245 = ssub.s32 256, 256
          %246 = vsyncadd [#allocation3], %s245
          %s247 = sshll.u32 [#allocation2], 4
          %s248 = int_to_ptr.vmem [resolvable:$true] %s247
          %253 = dma.hbm_to_vmem [thread:$0]  %s4, 256, %s248, [#allocation3], 64, 64, 4
        $region28: #{tpu_custom_call.1} parent=11 // pred_fallthru
          _
        // Predicated region
        $region29: #{tpu_custom_call.1} parent=11 // pred_check
          %p254 = pneg %p149
        $region30: #{tpu_custom_call.1} parent=11 // pred_check_branch
          %256 = sbr.rel (%p254) target = $region32
        $region31: #{tpu_custom_call.1} parent=11 // pred_region
          _
        $region32: #{tpu_custom_call.1} parent=11 // pred_fallthru
          _
        // Predicated region
        $region33: #{tpu_custom_call.1} parent=11 // pred_check
          %p257 = pneg %p170
        $region34: #{tpu_custom_call.1} parent=11 // pred_check_branch
          %259 = sbr.rel (%p257) target = $region36
        $region35: #{tpu_custom_call.1} parent=11 // pred_region
          _
        $region36: #{tpu_custom_call.1} parent=11 // pred_fallthru
          _
        // Predicated region
        $region37: #{tpu_custom_call.1} parent=11 // pred_check
          %p260 = pneg %p191
        $region38: #{tpu_custom_call.1} parent=11 // pred_check_branch
          %262 = sbr.rel (%p260) target = $region40
        $region39: #{tpu_custom_call.1} parent=11 // pred_region
          _
        $region40: #{tpu_custom_call.1} parent=11 // pred_fallthru
          _
      $region12: #{tpu_custom_call.1} parent=5 // pred_fallthru
        _
      %p263 = scmp.lt.s32.totalorder %s18, 2
      // Predicated region
      $region41: #{tpu_custom_call.1} parent=5 // pred_check
        %p264 = pneg %p263
      $region42: #{tpu_custom_call.1} parent=5 // pred_check_branch
        %266 = sbr.rel (%p264) target = $region44
      $region43: #{tpu_custom_call.1} parent=5 // pred_region
        // Predicated region
        $region45: #{tpu_custom_call.1} parent=43 // pred_check
          %p267 = pneg %p38
        $region46: #{tpu_custom_call.1} parent=43 // pred_check_branch
          %269 = sbr.rel (%p267) target = $region48
        $region47: #{tpu_custom_call.1} parent=43 // pred_region
          %p270 = scmp.lt.s32.totalorder %s18, 1
          %s271 = scalar_select %p270, %s18, 1
          %s272 = smul.addr %s271, 8
          %s273 = scalar_lea.vmem %s0, %s272
        $region48: #{tpu_custom_call.1} parent=43 // pred_fallthru
          _
      $region44: #{tpu_custom_call.1} parent=5 // pred_fallthru
        _
      %p274 = scmp.le.s32.totalorder 1, %s18
      %p275 = scmp.lt.s32.totalorder %s18, 3
      %p276 = pnand %p274, %p275
      %p277 = pneg %p276
      // Predicated region
      $region49: #{tpu_custom_call.1} parent=5 // pred_check
        _
      $region50: #{tpu_custom_call.1} parent=5 // pred_check_branch
        %279 = sbr.rel (%p276) target = $region52
      $region51: #{tpu_custom_call.1} parent=5 // pred_region
        %s280 = ssub.s32 %s18, 1
        // Predicated region
        $region53: #{tpu_custom_call.1} parent=51 // pred_check
          %p281 = pneg %p128
        $region54: #{tpu_custom_call.1} parent=51 // pred_check_branch
          %283 = sbr.rel (%p281) target = $region56
        $region55: #{tpu_custom_call.1} parent=51 // pred_region
          %284 = dma.done [#allocation3], 256
        $region56: #{tpu_custom_call.1} parent=51 // pred_fallthru
          _
        %p285 = scmp.lt.s32.totalorder %s23, 1
        %s286 = scalar_select %p285, %s23, 1
        %s287 = smul.addr %s286, 8
        %s288 = scalar_lea.vmem %s0, %s287
        %p289 = pneg %p44
        %p290 = pneg %p41
        %p291 = pneg %p65
        %p292 = pneg %p62
        %p293 = pneg %p86
        %p294 = pneg %p83
        %p295 = pneg %p107
        %p296 = pneg %p104
        %p297 = pneg %p128
        %p298 = pneg %p125
        %p299 = pneg %p149
        %p300 = pneg %p146
        %p301 = pneg %p170
        %p302 = pneg %p167
        %p303 = pneg %p191
        %p304 = pneg %p188
        %p305 = pneg %p217
        %p306 = pneg %p214
        %s307 = sand.u32 %s204, 1
        %s308 = scalar_lea.sflag [#allocation4], %s307
        %s309 = sand.u32 %s204, 1
        %s310 = smul.addr %s309, 8
        %s311 = scalar_lea.vmem [#allocation5], %s310
        %p312 = scmp.lt.s32.totalorder %s23, 1
        %s313 = scalar_select %p312, %s23, 1
        %s314 = smul.addr %s313, 8
        %s315 = scalar_lea.vmem %s0, %s314
        %v317 = vld [vmem:[%s1] sm:$0xf]
        %v318 = vld [vmem:[%s1 + $0x4] sm:$0xf]
        %v319 = vld [vmem:[%s1 + $0x8] sm:$0xf]
        %v320 = vld [vmem:[%s1 + $0xc] sm:$0xf]
        %v321 = vld [vmem:[%s3] sm:$0xf]
        %v322 = vld [vmem:[%s3 + $0x4] sm:$0xf]
        %v323 = vld [vmem:[%s3 + $0x8] sm:$0xf]
        %v324 = vld [vmem:[%s3 + $0xc] sm:$0xf]
        %v325 = vld [vmem:[#allocation2] sm:$0xf]
        %v326 = vld [vmem:[#allocation2 + $0x4] sm:$0xf]
        %v327 = vld [vmem:[#allocation2 + $0x8] sm:$0xf]
        %v328 = vld [vmem:[#allocation2 + $0xc] sm:$0xf]
        %v329 = vld [vmem:[%s6] sm:$0xf]
        %v330 = vld [vmem:[%s6 + $0x4] sm:$0xf]
        %v331 = vld [vmem:[%s6 + $0x8] sm:$0xf]
        %v332 = vld [vmem:[%s6 + $0xc] sm:$0xf]
        %v333 = vld [vmem:[%s6 + $0x10] sm:$0xf]
        %v334 = vld [vmem:[%s6 + $0x14] sm:$0xf]
        %v335 = vld [vmem:[%s6 + $0x18] sm:$0xf]
        %v336 = vld [vmem:[%s6 + $0x1c] sm:$0xf]
        %v337 = vld [vmem:[%s2] sm:$0x1]
        %v339 = vlaneseq
        %v340 = vshrl.u32 %v339, 7
        %v341 = vsub.s32 0, %v340
        %v342 = vrot.slane %v337, %v341
        %v344 = vld [vmem:[%s5] sm:$0x1]
        %v346 = vlaneseq
        %v347 = vshrl.u32 %v346, 7
        %v348 = vsub.s32 0, %v347
        %v349 = vrot.slane %v344, %v348
        %v351 = vld [vmem:[%s7] sm:$0x3f]
        %v352 = vlaneseq
        %v353 = vshrl.u32 %v352, 7
        %v354 = vsub.s32 0, %v353
        %v355 = vrot.slane %v351, %v354
        %v356 = vlaneseq
        %v357 = vshrl.u32 %v356, 7
        %v358 = vsub.s32 1, %v357
        %v359 = vrot.slane %v351, %v358
        %v360 = vlaneseq
        %v361 = vshrl.u32 %v360, 7
        %v362 = vsub.s32 2, %v361
        %v363 = vrot.slane %v351, %v362
        %v364 = vlaneseq
        %v365 = vshrl.u32 %v364, 7
        %v366 = vsub.s32 3, %v365
        %v367 = vrot.slane %v351, %v366
        %v368 = vlaneseq
        %v369 = vshrl.u32 %v368, 7
        %v370 = vsub.s32 4, %v369
        %v371 = vrot.slane %v351, %v370
        %v372 = vlaneseq
        %v373 = vshrl.u32 %v372, 7
        %v374 = vsub.s32 5, %v373
        %v375 = vrot.slane %v351, %v374
        %v376 = vld [vmem:[%s315] sm:$0xff]
        %v377 = vpack.c.bf16 %v376, %v376
        %v382 = vunpack.c.l.b16 %v317
        %v383 = vunpack.c.l.b16 %v318
        %v384 = vunpack.c.l.b16 %v319
        %v385 = vunpack.c.l.b16 %v320
        %v386 = vpack.c.b16 %v383, %v382
        %v387 = vpack.c.b16 %v385, %v384
        %vm390 = vcmask 261120
        %v392 = vsel %vm390, %v377, 0
        %394 = vmatprep.subr.bf16.mxu0 0
        %395 = vmatpush1.bf16.msra.mxu0 %v386
        %396 = vmatprep.subr.bf16.mxu0 0
        %397 = vmatpush1.bf16.msra.mxu0 %v387
        %398 = vmatprep.subr.bf16.mxu0 0
        %399 = vmatpush1.bf16.msra.mxu0 0
        %400 = vmatprep.subr.bf16.mxu0 0
        %401 = vmatpush1.bf16.msra.mxu0 0
        %402 = vmatprep.subr.bf16.mxu0 0
        %403 = vmatpush1.bf16.msra.mxu0 0
        %404 = vmatprep.subr.bf16.mxu0 0
        %405 = vmatpush1.bf16.msra.mxu0 0
        %406 = vmatprep.subr.bf16.mxu0 0
        %407 = vmatpush1.bf16.msra.mxu0 0
        %408 = vmatprep.subr.bf16.mxu0 0
        %409 = vmatpush1.bf16.msra.mxu0 0
        %410 = vmatprep.subr.bf16.mxu0 0
        %411 = vmatpush1.bf16.msra.mxu0 0
        %412 = vmatprep.subr.bf16.mxu0 0
        %413 = vmatpush1.bf16.msra.mxu0 0
        %414 = vmatprep.subr.bf16.mxu0 0
        %415 = vmatpush1.bf16.msra.mxu0 0
        %416 = vmatprep.subr.bf16.mxu0 0
        %417 = vmatpush1.bf16.msra.mxu0 0
        %418 = vmatprep.subr.bf16.mxu0 0
        %419 = vmatpush1.bf16.msra.mxu0 0
        %420 = vmatprep.subr.bf16.mxu0 0
        %421 = vmatpush1.bf16.msra.mxu0 0
        %422 = vmatprep.subr.bf16.mxu0 0
        %423 = vmatpush1.bf16.msra.mxu0 0
        %424 = vmatprep.subr.bf16.mxu0 0
        %425 = vmatpush1.bf16.msra.mxu0 0
        %426 = vmatprep.mubr.bf16.mxu0 0
        %427 = vmatmul.mubr.bf16.gmra.mrb[0].mxu0 %v392
        %v428 = vpop.f32.mrb[0].mxu0
        %v429 = vadd.f32 %v342, %v428
        %v430 = vpop.f32.mrb[0].mxu0
        %v431 = vpop.f32.mrb[0].mxu0
        %v432 = vpop.f32.mrb[0].mxu0
        %433 = vdwg.mxu0
        %435 = vrot.lane.b32.xlu0 %v429, 120
        %v436 = vpop.permute.xlu0 %435
        %438 = vrot.lane.b32.xlu0 %v429, 112
        %v439 = vpop.permute.xlu0 %438
        %441 = vrot.lane.b32.xlu0 %v429, 104
        %v442 = vpop.permute.xlu0 %441
        %v444 = vpack.c.bf16 %v429, %v429
        %v445 = vpack.c.bf16 %v436, %v436
        %v446 = vpack.c.bf16 %v439, %v439
        %v447 = vpack.c.bf16 %v442, %v442
        %449 = vrot.lane.b32.xlu0 %v444, 96
        %v450 = vpop.permute.xlu0 %449
        %vm451 = vcmask 64512
        %v453 = vsel %vm451, %v444, 0
        %v456 = vsel %vm451, %v450, 0
        %458 = vmatprep.subr.bf16.mxu0 0
        %459 = vmatpush1.bf16.xpose.msra.mxu0 %v456
        %460 = vmatprep.subr.bf16.mxu0 0
        %461 = vmatpush1.bf16.xpose.msra.mxu0 0
        %462 = vmatprep.subr.bf16.mxu0 0
        %463 = vmatpush1.bf16.xpose.msra.mxu0 0
        %464 = vmatprep.subr.bf16.mxu0 0
        %465 = vmatpush1.bf16.xpose.msra.mxu0 0
        %466 = vmatprep.subr.bf16.mxu0 0
        %467 = vmatpush1.bf16.xpose.msra.mxu0 0
        %468 = vmatprep.subr.bf16.mxu0 0
        %469 = vmatpush1.bf16.xpose.msra.mxu0 0
        %470 = vmatprep.subr.bf16.mxu0 0
        %471 = vmatpush1.bf16.xpose.msra.mxu0 0
        %472 = vmatprep.subr.bf16.mxu0 0
        %473 = vmatpush1.bf16.xpose.msra.mxu0 0
        %474 = vmatprep.subr.bf16.mxu0 0
        %475 = vmatpush1.bf16.xpose.msra.mxu0 0
        %476 = vmatprep.subr.bf16.mxu0 0
        %477 = vmatpush1.bf16.xpose.msra.mxu0 0
        %478 = vmatprep.subr.bf16.mxu0 0
        %479 = vmatpush1.bf16.xpose.msra.mxu0 0
        %480 = vmatprep.subr.bf16.mxu0 0
        %481 = vmatpush1.bf16.xpose.msra.mxu0 0
        %482 = vmatprep.subr.bf16.mxu0 0
        %483 = vmatpush1.bf16.xpose.msra.mxu0 0
        %484 = vmatprep.subr.bf16.mxu0 0
        %485 = vmatpush1.bf16.xpose.msra.mxu0 0
        %486 = vmatprep.subr.bf16.mxu0 0
        %487 = vmatpush1.bf16.xpose.msra.mxu0 0
        %488 = vmatprep.subr.bf16.mxu0 0
        %489 = vmatpush1.bf16.xpose.msra.mxu0 0
        %490 = vmatprep.mubr.bf16.mxu0 0
        %491 = vmatmul.mubr.bf16.gmra.mrb[0].mxu0 %v453
        %v492 = vpop.f32.mrb[0].mxu0
        %v493 = vadd.f32 0.0, %v492
        %v494 = vpop.f32.mrb[0].mxu0
        %v495 = vpop.f32.mrb[0].mxu0
        %v496 = vpop.f32.mrb[0].mxu0
        %497 = vdwg.mxu0
        %499 = vrot.lane.b32.xlu0 %v445, 96
        %v500 = vpop.permute.xlu0 %499
        %v502 = vsel %vm451, %v445, 0
        %v505 = vsel %vm451, %v500, 0
        %507 = vmatprep.subr.bf16.mxu0 0
        %508 = vmatpush1.bf16.xpose.msra.mxu0 %v505
        %509 = vmatprep.subr.bf16.mxu0 0
        %510 = vmatpush1.bf16.xpose.msra.mxu0 0
        %511 = vmatprep.subr.bf16.mxu0 0
        %512 = vmatpush1.bf16.xpose.msra.mxu0 0
        %513 = vmatprep.subr.bf16.mxu0 0
        %514 = vmatpush1.bf16.xpose.msra.mxu0 0
        %515 = vmatprep.subr.bf16.mxu0 0
        %516 = vmatpush1.bf16.xpose.msra.mxu0 0
        %517 = vmatprep.subr.bf16.mxu0 0
        %518 = vmatpush1.bf16.xpose.msra.mxu0 0
        %519 = vmatprep.subr.bf16.mxu0 0
        %520 = vmatpush1.bf16.xpose.msra.mxu0 0
        %521 = vmatprep.subr.bf16.mxu0 0
        %522 = vmatpush1.bf16.xpose.msra.mxu0 0
        %523 = vmatprep.subr.bf16.mxu0 0
        %524 = vmatpush1.bf16.xpose.msra.mxu0 0
        %525 = vmatprep.subr.bf16.mxu0 0
        %526 = vmatpush1.bf16.xpose.msra.mxu0 0
        %527 = vmatprep.subr.bf16.mxu0 0
        %528 = vmatpush1.bf16.xpose.msra.mxu0 0
        %529 = vmatprep.subr.bf16.mxu0 0
        %530 = vmatpush1.bf16.xpose.msra.mxu0 0
        %531 = vmatprep.subr.bf16.mxu0 0
        %532 = vmatpush1.bf16.xpose.msra.mxu0 0
        %533 = vmatprep.subr.bf16.mxu0 0
        %534 = vmatpush1.bf16.xpose.msra.mxu0 0
        %535 = vmatprep.subr.bf16.mxu0 0
        %536 = vmatpush1.bf16.xpose.msra.mxu0 0
        %537 = vmatprep.subr.bf16.mxu0 0
        %538 = vmatpush1.bf16.xpose.msra.mxu0 0
        %539 = vmatprep.mubr.bf16.mxu0 0
        %540 = vmatmul.mubr.bf16.gmra.mrb[0].mxu0 %v502
        %v541 = vpop.f32.mrb[0].mxu0
        %v542 = vadd.f32 0.0, %v541
        %v543 = vpop.f32.mrb[0].mxu0
        %v544 = vpop.f32.mrb[0].mxu0
        %v545 = vpop.f32.mrb[0].mxu0
        %546 = vdwg.mxu0
        %548 = vrot.lane.b32.xlu0 %v446, 96
        %v549 = vpop.permute.xlu0 %548
        %v551 = vsel %vm451, %v446, 0
        %v554 = vsel %vm451, %v549, 0
        %556 = vmatprep.subr.bf16.mxu0 0
        %557 = vmatpush1.bf16.xpose.msra.mxu0 %v554
        %558 = vmatprep.subr.bf16.mxu0 0
        %559 = vmatpush1.bf16.xpose.msra.mxu0 0
        %560 = vmatprep.subr.bf16.mxu0 0
        %561 = vmatpush1.bf16.xpose.msra.mxu0 0
        %562 = vmatprep.subr.bf16.mxu0 0
        %563 = vmatpush1.bf16.xpose.msra.mxu0 0
        %564 = vmatprep.subr.bf16.mxu0 0
        %565 = vmatpush1.bf16.xpose.msra.mxu0 0
        %566 = vmatprep.subr.bf16.mxu0 0
        %567 = vmatpush1.bf16.xpose.msra.mxu0 0
        %568 = vmatprep.subr.bf16.mxu0 0
        %569 = vmatpush1.bf16.xpose.msra.mxu0 0
        %570 = vmatprep.subr.bf16.mxu0 0
        %571 = vmatpush1.bf16.xpose.msra.mxu0 0
        %572 = vmatprep.subr.bf16.mxu0 0
        %573 = vmatpush1.bf16.xpose.msra.mxu0 0
        %574 = vmatprep.subr.bf16.mxu0 0
        %575 = vmatpush1.bf16.xpose.msra.mxu0 0
        %576 = vmatprep.subr.bf16.mxu0 0
        %577 = vmatpush1.bf16.xpose.msra.mxu0 0
        %578 = vmatprep.subr.bf16.mxu0 0
        %579 = vmatpush1.bf16.xpose.msra.mxu0 0
        %580 = vmatprep.subr.bf16.mxu0 0
        %581 = vmatpush1.bf16.xpose.msra.mxu0 0
        %582 = vmatprep.subr.bf16.mxu0 0
        %583 = vmatpush1.bf16.xpose.msra.mxu0 0
        %584 = vmatprep.subr.bf16.mxu0 0
        %585 = vmatpush1.bf16.xpose.msra.mxu0 0
        %586 = vmatprep.subr.bf16.mxu0 0
        %587 = vmatpush1.bf16.xpose.msra.mxu0 0
        %588 = vmatprep.mubr.bf16.mxu0 0
        %589 = vmatmul.mubr.bf16.gmra.mrb[0].mxu0 %v551
        %v590 = vpop.f32.mrb[0].mxu0
        %v591 = vadd.f32 0.0, %v590
        %v592 = vpop.f32.mrb[0].mxu0
        %v593 = vpop.f32.mrb[0].mxu0
        %v594 = vpop.f32.mrb[0].mxu0
        %595 = vdwg.mxu0
        %597 = vrot.lane.b32.xlu0 %v447, 96
        %v598 = vpop.permute.xlu0 %597
        %v600 = vsel %vm451, %v447, 0
        %v603 = vsel %vm451, %v598, 0
        %605 = vmatprep.subr.bf16.mxu0 0
        %606 = vmatpush1.bf16.xpose.msra.mxu0 %v603
        %607 = vmatprep.subr.bf16.mxu0 0
        %608 = vmatpush1.bf16.xpose.msra.mxu0 0
        %609 = vmatprep.subr.bf16.mxu0 0
        %610 = vmatpush1.bf16.xpose.msra.mxu0 0
        %611 = vmatprep.subr.bf16.mxu0 0
        %612 = vmatpush1.bf16.xpose.msra.mxu0 0
        %613 = vmatprep.subr.bf16.mxu0 0
        %614 = vmatpush1.bf16.xpose.msra.mxu0 0
        %615 = vmatprep.subr.bf16.mxu0 0
        %616 = vmatpush1.bf16.xpose.msra.mxu0 0
        %617 = vmatprep.subr.bf16.mxu0 0
        %618 = vmatpush1.bf16.xpose.msra.mxu0 0
        %619 = vmatprep.subr.bf16.mxu0 0
        %620 = vmatpush1.bf16.xpose.msra.mxu0 0
        %621 = vmatprep.subr.bf16.mxu0 0
        %622 = vmatpush1.bf16.xpose.msra.mxu0 0
        %623 = vmatprep.subr.bf16.mxu0 0
        %624 = vmatpush1.bf16.xpose.msra.mxu0 0
        %625 = vmatprep.subr.bf16.mxu0 0
        %626 = vmatpush1.bf16.xpose.msra.mxu0 0
        %627 = vmatprep.subr.bf16.mxu0 0
        %628 = vmatpush1.bf16.xpose.msra.mxu0 0
        %629 = vmatprep.subr.bf16.mxu0 0
        %630 = vmatpush1.bf16.xpose.msra.mxu0 0
        %631 = vmatprep.subr.bf16.mxu0 0
        %632 = vmatpush1.bf16.xpose.msra.mxu0 0
        %633 = vmatprep.subr.bf16.mxu0 0
        %634 = vmatpush1.bf16.xpose.msra.mxu0 0
        %635 = vmatprep.subr.bf16.mxu0 0
        %636 = vmatpush1.bf16.xpose.msra.mxu0 0
        %637 = vmatprep.mubr.bf16.mxu0 0
        %638 = vmatmul.mubr.bf16.gmra.mrb[0].mxu0 %v600
        %v639 = vpop.f32.mrb[0].mxu0
        %v640 = vadd.f32 0.0, %v639
        %v641 = vpop.f32.mrb[0].mxu0
        %v642 = vpop.f32.mrb[0].mxu0
        %v643 = vpop.f32.mrb[0].mxu0
        %644 = vdwg.mxu0
        %v645 = vsel %vm451, %v493, -inf
        %646 = vmax.xlane.f32.xlu0 %v645
        %v647 = vpop.xlane.xlu0 %646
        %v648 = vsel %vm451, %v542, -inf
        %649 = vmax.xlane.f32.xlu0 %v648
        %v650 = vpop.xlane.xlu0 %649
        %v651 = vsel %vm451, %v591, -inf
        %652 = vmax.xlane.f32.xlu0 %v651
        %v653 = vpop.xlane.xlu0 %652
        %v654 = vsel %vm451, %v640, -inf
        %655 = vmax.xlane.f32.xlu0 %v654
        %v656 = vpop.xlane.xlu0 %655
        %v657 = vsub.f32 %v493, %v647
        %v658 = vsub.f32 %v542, %v650
        %v659 = vsub.f32 %v591, %v653
        %v660 = vsub.f32 %v640, %v656
        %v661 = vmul.f32 %v657, 1.442695
        %v662 = vpow.pop %v661
        %v663 = vmul.f32 %v658, 1.442695
        %v664 = vpow.pop %v663
        %v665 = vmul.f32 %v659, 1.442695
        %v666 = vpow.pop %v665
        %v667 = vmul.f32 %v660, 1.442695
        %v668 = vpow.pop %v667
        %v669 = vsel %vm451, %v662, 0.0
        %670 = vadd.xlane.f32.xlu0 %v669
        %v671 = vpop.xlane.xlu0 %670
        %v672 = vsel %vm451, %v664, 0.0
        %673 = vadd.xlane.f32.xlu0 %v672
        %v674 = vpop.xlane.xlu0 %673
        %v675 = vsel %vm451, %v666, 0.0
        %676 = vadd.xlane.f32.xlu0 %v675
        %v677 = vpop.xlane.xlu0 %676
        %v678 = vsel %vm451, %v668, 0.0
        %679 = vadd.xlane.f32.xlu0 %v678
        %v680 = vpop.xlane.xlu0 %679
        %v681 = vrcp.pop %v671
        %v682 = vmul.f32 %v662, %v681
        %v683 = vrcp.pop %v674
        %v684 = vmul.f32 %v664, %v683
        %v685 = vrcp.pop %v677
        %v686 = vmul.f32 %v666, %v685
        %v687 = vrcp.pop %v680
        %v688 = vmul.f32 %v668, %v687
        %v689 = vpack.c.bf16 %v682, %v682
        %v690 = vpack.c.bf16 %v684, %v684
        %v691 = vpack.c.bf16 %v686, %v686
        %v692 = vpack.c.bf16 %v688, %v688
        %693 = vrot.lane.b32.xlu0 %v444, 64
        %v694 = vpop.permute.xlu0 %693
        %v696 = vsel %vm451, %v689, 0
        %vm698 = vcmask 1043456
        %v700 = vsel %vm698, %v694, 0
        %702 = vmatprep.subr.bf16.mxu0 0
        %703 = vmatpush1.bf16.msra.mxu0 %v700
        %704 = vmatprep.subr.bf16.mxu0 0
        %705 = vmatpush1.bf16.msra.mxu0 0
        %706 = vmatprep.subr.bf16.mxu0 0
        %707 = vmatpush1.bf16.msra.mxu0 0
        %708 = vmatprep.subr.bf16.mxu0 0
        %709 = vmatpush1.bf16.msra.mxu0 0
        %710 = vmatprep.subr.bf16.mxu0 0
        %711 = vmatpush1.bf16.msra.mxu0 0
        %712 = vmatprep.subr.bf16.mxu0 0
        %713 = vmatpush1.bf16.msra.mxu0 0
        %714 = vmatprep.subr.bf16.mxu0 0
        %715 = vmatpush1.bf16.msra.mxu0 0
        %716 = vmatprep.subr.bf16.mxu0 0
        %717 = vmatpush1.bf16.msra.mxu0 0
        %718 = vmatprep.subr.bf16.mxu0 0
        %719 = vmatpush1.bf16.msra.mxu0 0
        %720 = vmatprep.subr.bf16.mxu0 0
        %721 = vmatpush1.bf16.msra.mxu0 0
        %722 = vmatprep.subr.bf16.mxu0 0
        %723 = vmatpush1.bf16.msra.mxu0 0
        %724 = vmatprep.subr.bf16.mxu0 0
        %725 = vmatpush1.bf16.msra.mxu0 0
        %726 = vmatprep.subr.bf16.mxu0 0
        %727 = vmatpush1.bf16.msra.mxu0 0
        %728 = vmatprep.subr.bf16.mxu0 0
        %729 = vmatpush1.bf16.msra.mxu0 0
        %730 = vmatprep.subr.bf16.mxu0 0
        %731 = vmatpush1.bf16.msra.mxu0 0
        %732 = vmatprep.subr.bf16.mxu0 0
        %733 = vmatpush1.bf16.msra.mxu0 0
        %734 = vmatprep.mubr.bf16.mxu0 0
        %735 = vmatmul.mubr.bf16.gmra.mrb[0].mxu0 %v696
        %v736 = vpop.f32.mrb[0].mxu0
        %v737 = vadd.f32 0.0, %v736
        %v738 = vpop.f32.mrb[0].mxu0
        %v739 = vpop.f32.mrb[0].mxu0
        %v740 = vpop.f32.mrb[0].mxu0
        %741 = vdwg.mxu0
        %742 = vrot.lane.b32.xlu0 %v445, 64
        %v743 = vpop.permute.xlu0 %742
        %v745 = vsel %vm451, %v690, 0
        %v748 = vsel %vm698, %v743, 0
        %750 = vmatprep.subr.bf16.mxu0 0
        %751 = vmatpush1.bf16.msra.mxu0 %v748
        %752 = vmatprep.subr.bf16.mxu0 0
        %753 = vmatpush1.bf16.msra.mxu0 0
        %754 = vmatprep.subr.bf16.mxu0 0
        %755 = vmatpush1.bf16.msra.mxu0 0
        %756 = vmatprep.subr.bf16.mxu0 0
        %757 = vmatpush1.bf16.msra.mxu0 0
        %758 = vmatprep.subr.bf16.mxu0 0
        %759 = vmatpush1.bf16.msra.mxu0 0
        %760 = vmatprep.subr.bf16.mxu0 0
        %761 = vmatpush1.bf16.msra.mxu0 0
        %762 = vmatprep.subr.bf16.mxu0 0
        %763 = vmatpush1.bf16.msra.mxu0 0
        %764 = vmatprep.subr.bf16.mxu0 0
        %765 = vmatpush1.bf16.msra.mxu0 0
        %766 = vmatprep.subr.bf16.mxu0 0
        %767 = vmatpush1.bf16.msra.mxu0 0
        %768 = vmatprep.subr.bf16.mxu0 0
        %769 = vmatpush1.bf16.msra.mxu0 0
        %770 = vmatprep.subr.bf16.mxu0 0
        %771 = vmatpush1.bf16.msra.mxu0 0
        %772 = vmatprep.subr.bf16.mxu0 0
        %773 = vmatpush1.bf16.msra.mxu0 0
        %774 = vmatprep.subr.bf16.mxu0 0
        %775 = vmatpush1.bf16.msra.mxu0 0
        %776 = vmatprep.subr.bf16.mxu0 0
        %777 = vmatpush1.bf16.msra.mxu0 0
        %778 = vmatprep.subr.bf16.mxu0 0
        %779 = vmatpush1.bf16.msra.mxu0 0
        %780 = vmatprep.subr.bf16.mxu0 0
        %781 = vmatpush1.bf16.msra.mxu0 0
        %782 = vmatprep.mubr.bf16.mxu0 0
        %783 = vmatmul.mubr.bf16.gmra.mrb[0].mxu0 %v745
        %v784 = vpop.f32.mrb[0].mxu0
        %v785 = vadd.f32 0.0, %v784
        %v786 = vpop.f32.mrb[0].mxu0
        %v787 = vpop.f32.mrb[0].mxu0
        %v788 = vpop.f32.mrb[0].mxu0
        %789 = vdwg.mxu0
        %790 = vrot.lane.b32.xlu0 %v446, 64
        %v791 = vpop.permute.xlu0 %790
        %v793 = vsel %vm451, %v691, 0
        %v796 = vsel %vm698, %v791, 0
        %798 = vmatprep.subr.bf16.mxu0 0
        %799 = vmatpush1.bf16.msra.mxu0 %v796
        %800 = vmatprep.subr.bf16.mxu0 0
        %801 = vmatpush1.bf16.msra.mxu0 0
        %802 = vmatprep.subr.bf16.mxu0 0
        %803 = vmatpush1.bf16.msra.mxu0 0
        %804 = vmatprep.subr.bf16.mxu0 0
        %805 = vmatpush1.bf16.msra.mxu0 0
        %806 = vmatprep.subr.bf16.mxu0 0
        %807 = vmatpush1.bf16.msra.mxu0 0
        %808 = vmatprep.subr.bf16.mxu0 0
        %809 = vmatpush1.bf16.msra.mxu0 0
        %810 = vmatprep.subr.bf16.mxu0 0
        %811 = vmatpush1.bf16.msra.mxu0 0
        %812 = vmatprep.subr.bf16.mxu0 0
        %813 = vmatpush1.bf16.msra.mxu0 0
        %814 = vmatprep.subr.bf16.mxu0 0
        %815 = vmatpush1.bf16.msra.mxu0 0
        %816 = vmatprep.subr.bf16.mxu0 0
        %817 = vmatpush1.bf16.msra.mxu0 0
        %818 = vmatprep.subr.bf16.mxu0 0
        %819 = vmatpush1.bf16.msra.mxu0 0
        %820 = vmatprep.subr.bf16.mxu0 0
        %821 = vmatpush1.bf16.msra.mxu0 0
        %822 = vmatprep.subr.bf16.mxu0 0
        %823 = vmatpush1.bf16.msra.mxu0 0
        %824 = vmatprep.subr.bf16.mxu0 0
        %825 = vmatpush1.bf16.msra.mxu0 0
        %826 = vmatprep.subr.bf16.mxu0 0
        %827 = vmatpush1.bf16.msra.mxu0 0
        %828 = vmatprep.subr.bf16.mxu0 0
        %829 = vmatpush1.bf16.msra.mxu0 0
        %830 = vmatprep.mubr.bf16.mxu0 0
        %831 = vmatmul.mubr.bf16.gmra.mrb[0].mxu0 %v793
        %v832 = vpop.f32.mrb[0].mxu0
        %v833 = vadd.f32 0.0, %v832
        %v834 = vpop.f32.mrb[0].mxu0
        %v835 = vpop.f32.mrb[0].mxu0
        %v836 = vpop.f32.mrb[0].mxu0
        %837 = vdwg.mxu0
        %838 = vrot.lane.b32.xlu0 %v447, 64
        %v839 = vpop.permute.xlu0 %838
        %v841 = vsel %vm451, %v692, 0
        %v844 = vsel %vm698, %v839, 0
        %846 = vmatprep.subr.bf16.mxu0 0
        %847 = vmatpush1.bf16.msra.mxu0 %v844
        %848 = vmatprep.subr.bf16.mxu0 0
        %849 = vmatpush1.bf16.msra.mxu0 0
        %850 = vmatprep.subr.bf16.mxu0 0
        %851 = vmatpush1.bf16.msra.mxu0 0
        %852 = vmatprep.subr.bf16.mxu0 0
        %853 = vmatpush1.bf16.msra.mxu0 0
        %854 = vmatprep.subr.bf16.mxu0 0
        %855 = vmatpush1.bf16.msra.mxu0 0
        %856 = vmatprep.subr.bf16.mxu0 0
        %857 = vmatpush1.bf16.msra.mxu0 0
        %858 = vmatprep.subr.bf16.mxu0 0
        %859 = vmatpush1.bf16.msra.mxu0 0
        %860 = vmatprep.subr.bf16.mxu0 0
        %861 = vmatpush1.bf16.msra.mxu0 0
        %862 = vmatprep.subr.bf16.mxu0 0
        %863 = vmatpush1.bf16.msra.mxu0 0
        %864 = vmatprep.subr.bf16.mxu0 0
        %865 = vmatpush1.bf16.msra.mxu0 0
        %866 = vmatprep.subr.bf16.mxu0 0
        %867 = vmatpush1.bf16.msra.mxu0 0
        %868 = vmatprep.subr.bf16.mxu0 0
        %869 = vmatpush1.bf16.msra.mxu0 0
        %870 = vmatprep.subr.bf16.mxu0 0
        %871 = vmatpush1.bf16.msra.mxu0 0
        %872 = vmatprep.subr.bf16.mxu0 0
        %873 = vmatpush1.bf16.msra.mxu0 0
        %874 = vmatprep.subr.bf16.mxu0 0
        %875 = vmatpush1.bf16.msra.mxu0 0
        %876 = vmatprep.subr.bf16.mxu0 0
        %877 = vmatpush1.bf16.msra.mxu0 0
        %878 = vmatprep.mubr.bf16.mxu0 0
        %879 = vmatmul.mubr.bf16.gmra.mrb[0].mxu0 %v841
        %v880 = vpop.f32.mrb[0].mxu0
        %v881 = vadd.f32 0.0, %v880
        %v882 = vpop.f32.mrb[0].mxu0
        %v883 = vpop.f32.mrb[0].mxu0
        %v884 = vpop.f32.mrb[0].mxu0
        %885 = vdwg.mxu0
        %887 = vrot.lane.b32.xlu0 %v785, 8
        %v888 = vpop.permute.xlu0 %887
        %891 = vrot.lane.b32.xlu0 %v833, 16
        %v892 = vpop.permute.xlu0 %891
        %895 = vrot.lane.b32.xlu0 %v881, 24
        %v896 = vpop.permute.xlu0 %895
        %v898 = vsel %vm451, %v737, %v888
        %vm899 = vcmask 130048
        %v900 = vsel %vm899, %v898, %v892
        %vm901 = vcmask 195584
        %v902 = vsel %vm901, %v900, %v896
        %v903 = vpack.c.bf16 %v902, %v902
        %v908 = vunpack.c.l.b16 %v321
        %v909 = vunpack.c.l.b16 %v322
        %v910 = vunpack.c.l.b16 %v323
        %v911 = vunpack.c.l.b16 %v324
        %v912 = vpack.c.b16 %v909, %v908
        %v913 = vpack.c.b16 %v911, %v910
        %v917 = vsel %vm390, %v903, 0
        %919 = vmatprep.subr.bf16.mxu0 0
        %920 = vmatpush1.bf16.msra.mxu0 %v912
        %921 = vmatprep.subr.bf16.mxu0 0
        %922 = vmatpush1.bf16.msra.mxu0 %v913
        %923 = vmatprep.subr.bf16.mxu0 0
        %924 = vmatpush1.bf16.msra.mxu0 0
        %925 = vmatprep.subr.bf16.mxu0 0
        %926 = vmatpush1.bf16.msra.mxu0 0
        %927 = vmatprep.subr.bf16.mxu0 0
        %928 = vmatpush1.bf16.msra.mxu0 0
        %929 = vmatprep.subr.bf16.mxu0 0
        %930 = vmatpush1.bf16.msra.mxu0 0
        %931 = vmatprep.subr.bf16.mxu0 0
        %932 = vmatpush1.bf16.msra.mxu0 0
        %933 = vmatprep.subr.bf16.mxu0 0
        %934 = vmatpush1.bf16.msra.mxu0 0
        %935 = vmatprep.subr.bf16.mxu0 0
        %936 = vmatpush1.bf16.msra.mxu0 0
        %937 = vmatprep.subr.bf16.mxu0 0
        %938 = vmatpush1.bf16.msra.mxu0 0
        %939 = vmatprep.subr.bf16.mxu0 0
        %940 = vmatpush1.bf16.msra.mxu0 0
        %941 = vmatprep.subr.bf16.mxu0 0
        %942 = vmatpush1.bf16.msra.mxu0 0
        %943 = vmatprep.subr.bf16.mxu0 0
        %944 = vmatpush1.bf16.msra.mxu0 0
        %945 = vmatprep.subr.bf16.mxu0 0
        %946 = vmatpush1.bf16.msra.mxu0 0
        %947 = vmatprep.subr.bf16.mxu0 0
        %948 = vmatpush1.bf16.msra.mxu0 0
        %949 = vmatprep.subr.bf16.mxu0 0
        %950 = vmatpush1.bf16.msra.mxu0 0
        %951 = vmatprep.mubr.bf16.mxu0 0
        %952 = vmatmul.mubr.bf16.gmra.mrb[0].mxu0 %v917
        %v953 = vpop.f32.mrb[0].mxu0
        %v954 = vadd.f32 %v355, %v953
        %v955 = vpop.f32.mrb[0].mxu0
        %v956 = vpop.f32.mrb[0].mxu0
        %v957 = vpop.f32.mrb[0].mxu0
        %958 = vdwg.mxu0
        %v959 = vadd.f32 %v376, %v954
        %v960 = vsel %vm390, %v959, 0.0
        %961 = vadd.xlane.f32.xlu0 %v960
        %v962 = vpop.xlane.xlu0 %961
        %v963 = vrcp.pop 32.0
        %v964 = vmul.f32 %v962, %v963
        %v965 = vsub.f32 %v959, %v964
        %v966 = vmul.f32 %v965, %v965
        %v967 = vsel %vm390, %v966, 0.0
        %968 = vadd.xlane.f32.xlu0 %v967
        %v969 = vpop.xlane.xlu0 %968
        %v970 = vmul.f32 %v969, %v963
        %v971 = vadd.f32 %v970, 1e-05
        %v972 = vrsqrt.pop %v971
        %v973 = vmul.f32 %v965, %v972
        %v974 = vmul.f32 %v973, %v359
        %v975 = vadd.f32 %v974, %v363
        %v976 = vpack.c.bf16 %v975, %v975
        %v981 = vunpack.c.l.b16 %v325
        %v982 = vunpack.c.l.b16 %v326
        %v983 = vunpack.c.l.b16 %v327
        %v984 = vunpack.c.l.b16 %v328
        %v985 = vpack.c.b16 %v982, %v981
        %v986 = vpack.c.b16 %v984, %v983
        %v990 = vsel %vm390, %v976, 0
        %992 = vmatprep.subr.bf16.mxu0 0
        %993 = vmatpush1.bf16.msra.mxu0 %v985
        %994 = vmatprep.subr.bf16.mxu0 0
        %995 = vmatpush1.bf16.msra.mxu0 %v986
        %996 = vmatprep.subr.bf16.mxu0 0
        %997 = vmatpush1.bf16.msra.mxu0 0
        %998 = vmatprep.subr.bf16.mxu0 0
        %999 = vmatpush1.bf16.msra.mxu0 0
        %1000 = vmatprep.subr.bf16.mxu0 0
        %1001 = vmatpush1.bf16.msra.mxu0 0
        %1002 = vmatprep.subr.bf16.mxu0 0
        %1003 = vmatpush1.bf16.msra.mxu0 0
        %1004 = vmatprep.subr.bf16.mxu0 0
        %1005 = vmatpush1.bf16.msra.mxu0 0
        %1006 = vmatprep.subr.bf16.mxu0 0
        %1007 = vmatpush1.bf16.msra.mxu0 0
        %1008 = vmatprep.subr.bf16.mxu0 0
        %1009 = vmatpush1.bf16.msra.mxu0 0
        %1010 = vmatprep.subr.bf16.mxu0 0
        %1011 = vmatpush1.bf16.msra.mxu0 0
        %1012 = vmatprep.subr.bf16.mxu0 0
        %1013 = vmatpush1.bf16.msra.mxu0 0
        %1014 = vmatprep.subr.bf16.mxu0 0
        %1015 = vmatpush1.bf16.msra.mxu0 0
        %1016 = vmatprep.subr.bf16.mxu0 0
        %1017 = vmatpush1.bf16.msra.mxu0 0
        %1018 = vmatprep.subr.bf16.mxu0 0
        %1019 = vmatpush1.bf16.msra.mxu0 0
        %1020 = vmatprep.subr.bf16.mxu0 0
        %1021 = vmatpush1.bf16.msra.mxu0 0
        %1022 = vmatprep.subr.bf16.mxu0 0
        %1023 = vmatpush1.bf16.msra.mxu0 0
        %1024 = vmatprep.mubr.bf16.mxu0 0
        %1025 = vmatmul.mubr.bf16.gmra.mrb[0].mxu0 %v990
        %v1026 = vpop.f32.mrb[0].mxu0
        %v1027 = vadd.f32 %v349, %v1026
        %v1028 = vpop.f32.mrb[0].mxu0
        %v1029 = vpop.f32.mrb[0].mxu0
        %v1030 = vpop.f32.mrb[0].mxu0
        %1031 = vdwg.mxu0
        %v1032 = vmax.f32 %v1027, 0.0
        %v1033 = vpack.c.bf16 %v1032, %v1032
        %v1042 = vunpack.c.l.b16 %v329
        %v1043 = vunpack.c.l.b16 %v330
        %v1044 = vunpack.c.l.b16 %v331
        %v1045 = vunpack.c.l.b16 %v332
        %v1046 = vunpack.c.l.b16 %v333
        %v1047 = vunpack.c.l.b16 %v334
        %v1048 = vunpack.c.l.b16 %v335
        %v1049 = vunpack.c.l.b16 %v336
        %v1050 = vpack.c.b16 %v1043, %v1042
        %v1051 = vpack.c.b16 %v1045, %v1044
        %v1052 = vpack.c.b16 %v1047, %v1046
        %v1053 = vpack.c.b16 %v1049, %v1048
        %vm1058 = vcmask 523264
        %v1060 = vsel %vm1058, %v1033, 0
        %1062 = vmatprep.subr.bf16.mxu0 0
        %1063 = vmatpush1.bf16.msra.mxu0 %v1050
        %1064 = vmatprep.subr.bf16.mxu0 0
        %1065 = vmatpush1.bf16.msra.mxu0 %v1051
        %1066 = vmatprep.subr.bf16.mxu0 0
        %1067 = vmatpush1.bf16.msra.mxu0 %v1052
        %1068 = vmatprep.subr.bf16.mxu0 0
        %1069 = vmatpush1.bf16.msra.mxu0 %v1053
        %1070 = vmatprep.subr.bf16.mxu0 0
        %1071 = vmatpush1.bf16.msra.mxu0 0
        %1072 = vmatprep.subr.bf16.mxu0 0
        %1073 = vmatpush1.bf16.msra.mxu0 0
        %1074 = vmatprep.subr.bf16.mxu0 0
        %1075 = vmatpush1.bf16.msra.mxu0 0
        %1076 = vmatprep.subr.bf16.mxu0 0
        %1077 = vmatpush1.bf16.msra.mxu0 0
        %1078 = vmatprep.subr.bf16.mxu0 0
        %1079 = vmatpush1.bf16.msra.mxu0 0
        %1080 = vmatprep.subr.bf16.mxu0 0
        %1081 = vmatpush1.bf16.msra.mxu0 0
        %1082 = vmatprep.subr.bf16.mxu0 0
        %1083 = vmatpush1.bf16.msra.mxu0 0
        %1084 = vmatprep.subr.bf16.mxu0 0
        %1085 = vmatpush1.bf16.msra.mxu0 0
        %1086 = vmatprep.subr.bf16.mxu0 0
        %1087 = vmatpush1.bf16.msra.mxu0 0
        %1088 = vmatprep.subr.bf16.mxu0 0
        %1089 = vmatpush1.bf16.msra.mxu0 0
        %1090 = vmatprep.subr.bf16.mxu0 0
        %1091 = vmatpush1.bf16.msra.mxu0 0
        %1092 = vmatprep.subr.bf16.mxu0 0
        %1093 = vmatpush1.bf16.msra.mxu0 0
        %1094 = vmatprep.mubr.bf16.mxu0 0
        %1095 = vmatmul.mubr.bf16.gmra.mrb[0].mxu0 %v1060
        %v1096 = vpop.f32.mrb[0].mxu0
        %v1097 = vadd.f32 %v367, %v1096
        %v1098 = vpop.f32.mrb[0].mxu0
        %v1099 = vpop.f32.mrb[0].mxu0
        %v1100 = vpop.f32.mrb[0].mxu0
        %1101 = vdwg.mxu0
        %v1102 = vadd.f32 %v975, %v1097
        %v1103 = vsel %vm390, %v1102, 0.0
        %1104 = vadd.xlane.f32.xlu0 %v1103
        %v1105 = vpop.xlane.xlu0 %1104
        %v1106 = vmul.f32 %v1105, %v963
        %v1107 = vsub.f32 %v1102, %v1106
        %v1108 = vmul.f32 %v1107, %v1107
        %v1109 = vsel %vm390, %v1108, 0.0
        %1110 = vadd.xlane.f32.xlu0 %v1109
        %v1111 = vpop.xlane.xlu0 %1110
        %v1112 = vmul.f32 %v1111, %v963
        %v1113 = vadd.f32 %v1112, 1e-05
        %v1114 = vrsqrt.pop %v1113
        %v1115 = vmul.f32 %v1107, %v1114
        %v1116 = vmul.f32 %v1115, %v371
        %v1117 = vadd.f32 %v1116, %v375
        %v1118 = vadd.f32 %v376, %v1117
        %v1119 = vpack.c.bf16 %v1118, %v1118
        %v1121 = vsel %vm390, %v1119, 0
        %1123 = vmatprep.subr.bf16.mxu0 0
        %1124 = vmatpush1.bf16.msra.mxu0 %v386
        %1125 = vmatprep.subr.bf16.mxu0 0
        %1126 = vmatpush1.bf16.msra.mxu0 %v387
        %1127 = vmatprep.subr.bf16.mxu0 0
        %1128 = vmatpush1.bf16.msra.mxu0 0
        %1129 = vmatprep.subr.bf16.mxu0 0
        %1130 = vmatpush1.bf16.msra.mxu0 0
        %1131 = vmatprep.subr.bf16.mxu0 0
        %1132 = vmatpush1.bf16.msra.mxu0 0
        %1133 = vmatprep.subr.bf16.mxu0 0
        %1134 = vmatpush1.bf16.msra.mxu0 0
        %1135 = vmatprep.subr.bf16.mxu0 0
        %1136 = vmatpush1.bf16.msra.mxu0 0
        %1137 = vmatprep.subr.bf16.mxu0 0
        %1138 = vmatpush1.bf16.msra.mxu0 0
        %1139 = vmatprep.subr.bf16.mxu0 0
        %1140 = vmatpush1.bf16.msra.mxu0 0
        %1141 = vmatprep.subr.bf16.mxu0 0
        %1142 = vmatpush1.bf16.msra.mxu0 0
        %1143 = vmatprep.subr.bf16.mxu0 0
        %1144 = vmatpush1.bf16.msra.mxu0 0
        %1145 = vmatprep.subr.bf16.mxu0 0
        %1146 = vmatpush1.bf16.msra.mxu0 0
        %1147 = vmatprep.subr.bf16.mxu0 0
        %1148 = vmatpush1.bf16.msra.mxu0 0
        %1149 = vmatprep.subr.bf16.mxu0 0
        %1150 = vmatpush1.bf16.msra.mxu0 0
        %1151 = vmatprep.subr.bf16.mxu0 0
        %1152 = vmatpush1.bf16.msra.mxu0 0
        %1153 = vmatprep.subr.bf16.mxu0 0
        %1154 = vmatpush1.bf16.msra.mxu0 0
        %1155 = vmatprep.mubr.bf16.mxu0 0
        %1156 = vmatmul.mubr.bf16.gmra.mrb[0].mxu0 %v1121
        %v1157 = vpop.f32.mrb[0].mxu0
        %v1158 = vadd.f32 %v342, %v1157
        %v1159 = vpop.f32.mrb[0].mxu0
        %v1160 = vpop.f32.mrb[0].mxu0
        %v1161 = vpop.f32.mrb[0].mxu0
        %1162 = vdwg.mxu0
        %1164 = vrot.lane.b32.xlu0 %v1158, 120
        %v1165 = vpop.permute.xlu0 %1164
        %1167 = vrot.lane.b32.xlu0 %v1158, 112
        %v1168 = vpop.permute.xlu0 %1167
        %1170 = vrot.lane.b32.xlu0 %v1158, 104
        %v1171 = vpop.permute.xlu0 %1170
        %v1173 = vpack.c.bf16 %v1158, %v1158
        %v1174 = vpack.c.bf16 %v1165, %v1165
        %v1175 = vpack.c.bf16 %v1168, %v1168
        %v1176 = vpack.c.bf16 %v1171, %v1171
        %1178 = vrot.lane.b32.xlu0 %v1173, 96
        %v1179 = vpop.permute.xlu0 %1178
        %v1181 = vsel %vm451, %v1173, 0
        %v1184 = vsel %vm451, %v1179, 0
        %1186 = vmatprep.subr.bf16.mxu0 0
        %1187 = vmatpush1.bf16.xpose.msra.mxu0 %v1184
        %1188 = vmatprep.subr.bf16.mxu0 0
        %1189 = vmatpush1.bf16.xpose.msra.mxu0 0
        %1190 = vmatprep.subr.bf16.mxu0 0
        %1191 = vmatpush1.bf16.xpose.msra.mxu0 0
        %1192 = vmatprep.subr.bf16.mxu0 0
        %1193 = vmatpush1.bf16.xpose.msra.mxu0 0
        %1194 = vmatprep.subr.bf16.mxu0 0
        %1195 = vmatpush1.bf16.xpose.msra.mxu0 0
        %1196 = vmatprep.subr.bf16.mxu0 0
        %1197 = vmatpush1.bf16.xpose.msra.mxu0 0
        %1198 = vmatprep.subr.bf16.mxu0 0
        %1199 = vmatpush1.bf16.xpose.msra.mxu0 0
        %1200 = vmatprep.subr.bf16.mxu0 0
        %1201 = vmatpush1.bf16.xpose.msra.mxu0 0
        %1202 = vmatprep.subr.bf16.mxu0 0
        %1203 = vmatpush1.bf16.xpose.msra.mxu0 0
        %1204 = vmatprep.subr.bf16.mxu0 0
        %1205 = vmatpush1.bf16.xpose.msra.mxu0 0
        %1206 = vmatprep.subr.bf16.mxu0 0
        %1207 = vmatpush1.bf16.xpose.msra.mxu0 0
        %1208 = vmatprep.subr.bf16.mxu0 0
        %1209 = vmatpush1.bf16.xpose.msra.mxu0 0
        %1210 = vmatprep.subr.bf16.mxu0 0
        %1211 = vmatpush1.bf16.xpose.msra.mxu0 0
        %1212 = vmatprep.subr.bf16.mxu0 0
        %1213 = vmatpush1.bf16.xpose.msra.mxu0 0
        %1214 = vmatprep.subr.bf16.mxu0 0
        %1215 = vmatpush1.bf16.xpose.msra.mxu0 0
        %1216 = vmatprep.subr.bf16.mxu0 0
        %1217 = vmatpush1.bf16.xpose.msra.mxu0 0
        %1218 = vmatprep.mubr.bf16.mxu0 0
        %1219 = vmatmul.mubr.bf16.gmra.mrb[0].mxu0 %v1181
        %v1220 = vpop.f32.mrb[0].mxu0
        %v1221 = vadd.f32 0.0, %v1220
        %v1222 = vpop.f32.mrb[0].mxu0
        %v1223 = vpop.f32.mrb[0].mxu0
        %v1224 = vpop.f32.mrb[0].mxu0
        %1225 = vdwg.mxu0
        %1227 = vrot.lane.b32.xlu0 %v1174, 96
        %v1228 = vpop.permute.xlu0 %1227
        %v1230 = vsel %vm451, %v1174, 0
        %v1233 = vsel %vm451, %v1228, 0
        %1235 = vmatprep.subr.bf16.mxu0 0
        %1236 = vmatpush1.bf16.xpose.msra.mxu0 %v1233
        %1237 = vmatprep.subr.bf16.mxu0 0
        %1238 = vmatpush1.bf16.xpose.msra.mxu0 0
        %1239 = vmatprep.subr.bf16.mxu0 0
        %1240 = vmatpush1.bf16.xpose.msra.mxu0 0
        %1241 = vmatprep.subr.bf16.mxu0 0
        %1242 = vmatpush1.bf16.xpose.msra.mxu0 0
        %1243 = vmatprep.subr.bf16.mxu0 0
        %1244 = vmatpush1.bf16.xpose.msra.mxu0 0
        %1245 = vmatprep.subr.bf16.mxu0 0
        %1246 = vmatpush1.bf16.xpose.msra.mxu0 0
        %1247 = vmatprep.subr.bf16.mxu0 0
        %1248 = vmatpush1.bf16.xpose.msra.mxu0 0
        %1249 = vmatprep.subr.bf16.mxu0 0
        %1250 = vmatpush1.bf16.xpose.msra.mxu0 0
        %1251 = vmatprep.subr.bf16.mxu0 0
        %1252 = vmatpush1.bf16.xpose.msra.mxu0 0
        %1253 = vmatprep.subr.bf16.mxu0 0
        %1254 = vmatpush1.bf16.xpose.msra.mxu0 0
        %1255 = vmatprep.subr.bf16.mxu0 0
        %1256 = vmatpush1.bf16.xpose.msra.mxu0 0
        %1257 = vmatprep.subr.bf16.mxu0 0
        %1258 = vmatpush1.bf16.xpose.msra.mxu0 0
        %1259 = vmatprep.subr.bf16.mxu0 0
        %1260 = vmatpush1.bf16.xpose.msra.mxu0 0
        %1261 = vmatprep.subr.bf16.mxu0 0
        %1262 = vmatpush1.bf16.xpose.msra.mxu0 0
        %1263 = vmatprep.subr.bf16.mxu0 0
        %1264 = vmatpush1.bf16.xpose.msra.mxu0 0
        %1265 = vmatprep.subr.bf16.mxu0 0
        %1266 = vmatpush1.bf16.xpose.msra.mxu0 0
        %1267 = vmatprep.mubr.bf16.mxu0 0
        %1268 = vmatmul.mubr.bf16.gmra.mrb[0].mxu0 %v1230
        %v1269 = vpop.f32.mrb[0].mxu0
        %v1270 = vadd.f32 0.0, %v1269
        %v1271 = vpop.f32.mrb[0].mxu0
        %v1272 = vpop.f32.mrb[0].mxu0
        %v1273 = vpop.f32.mrb[0].mxu0
        %1274 = vdwg.mxu0
        %1276 = vrot.lane.b32.xlu0 %v1175, 96
        %v1277 = vpop.permute.xlu0 %1276
        %v1279 = vsel %vm451, %v1175, 0
        %v1282 = vsel %vm451, %v1277, 0
        %1284 = vmatprep.subr.bf16.mxu0 0
        %1285 = vmatpush1.bf16.xpose.msra.mxu0 %v1282
        %1286 = vmatprep.subr.bf16.mxu0 0
        %1287 = vmatpush1.bf16.xpose.msra.mxu0 0
        %1288 = vmatprep.subr.bf16.mxu0 0
        %1289 = vmatpush1.bf16.xpose.msra.mxu0 0
        %1290 = vmatprep.subr.bf16.mxu0 0
        %1291 = vmatpush1.bf16.xpose.msra.mxu0 0
        %1292 = vmatprep.subr.bf16.mxu0 0
        %1293 = vmatpush1.bf16.xpose.msra.mxu0 0
        %1294 = vmatprep.subr.bf16.mxu0 0
        %1295 = vmatpush1.bf16.xpose.msra.mxu0 0
        %1296 = vmatprep.subr.bf16.mxu0 0
        %1297 = vmatpush1.bf16.xpose.msra.mxu0 0
        %1298 = vmatprep.subr.bf16.mxu0 0
        %1299 = vmatpush1.bf16.xpose.msra.mxu0 0
        %1300 = vmatprep.subr.bf16.mxu0 0
        %1301 = vmatpush1.bf16.xpose.msra.mxu0 0
        %1302 = vmatprep.subr.bf16.mxu0 0
        %1303 = vmatpush1.bf16.xpose.msra.mxu0 0
        %1304 = vmatprep.subr.bf16.mxu0 0
        %1305 = vmatpush1.bf16.xpose.msra.mxu0 0
        %1306 = vmatprep.subr.bf16.mxu0 0
        %1307 = vmatpush1.bf16.xpose.msra.mxu0 0
        %1308 = vmatprep.subr.bf16.mxu0 0
        %1309 = vmatpush1.bf16.xpose.msra.mxu0 0
        %1310 = vmatprep.subr.bf16.mxu0 0
        %1311 = vmatpush1.bf16.xpose.msra.mxu0 0
        %1312 = vmatprep.subr.bf16.mxu0 0
        %1313 = vmatpush1.bf16.xpose.msra.mxu0 0
        %1314 = vmatprep.subr.bf16.mxu0 0
        %1315 = vmatpush1.bf16.xpose.msra.mxu0 0
        %1316 = vmatprep.mubr.bf16.mxu0 0
        %1317 = vmatmul.mubr.bf16.gmra.mrb[0].mxu0 %v1279
        %v1318 = vpop.f32.mrb[0].mxu0
        %v1319 = vadd.f32 0.0, %v1318
        %v1320 = vpop.f32.mrb[0].mxu0
        %v1321 = vpop.f32.mrb[0].mxu0
        %v1322 = vpop.f32.mrb[0].mxu0
        %1323 = vdwg.mxu0
        %1325 = vrot.lane.b32.xlu0 %v1176, 96
        %v1326 = vpop.permute.xlu0 %1325
        %v1328 = vsel %vm451, %v1176, 0
        %v1331 = vsel %vm451, %v1326, 0
        %1333 = vmatprep.subr.bf16.mxu0 0
        %1334 = vmatpush1.bf16.xpose.msra.mxu0 %v1331
        %1335 = vmatprep.subr.bf16.mxu0 0
        %1336 = vmatpush1.bf16.xpose.msra.mxu0 0
        %1337 = vmatprep.subr.bf16.mxu0 0
        %1338 = vmatpush1.bf16.xpose.msra.mxu0 0
        %1339 = vmatprep.subr.bf16.mxu0 0
        %1340 = vmatpush1.bf16.xpose.msra.mxu0 0
        %1341 = vmatprep.subr.bf16.mxu0 0
        %1342 = vmatpush1.bf16.xpose.msra.mxu0 0
        %1343 = vmatprep.subr.bf16.mxu0 0
        %1344 = vmatpush1.bf16.xpose.msra.mxu0 0
        %1345 = vmatprep.subr.bf16.mxu0 0
        %1346 = vmatpush1.bf16.xpose.msra.mxu0 0
        %1347 = vmatprep.subr.bf16.mxu0 0
        %1348 = vmatpush1.bf16.xpose.msra.mxu0 0
        %1349 = vmatprep.subr.bf16.mxu0 0
        %1350 = vmatpush1.bf16.xpose.msra.mxu0 0
        %1351 = vmatprep.subr.bf16.mxu0 0
        %1352 = vmatpush1.bf16.xpose.msra.mxu0 0
        %1353 = vmatprep.subr.bf16.mxu0 0
        %1354 = vmatpush1.bf16.xpose.msra.mxu0 0
        %1355 = vmatprep.subr.bf16.mxu0 0
        %1356 = vmatpush1.bf16.xpose.msra.mxu0 0
        %1357 = vmatprep.subr.bf16.mxu0 0
        %1358 = vmatpush1.bf16.xpose.msra.mxu0 0
        %1359 = vmatprep.subr.bf16.mxu0 0
        %1360 = vmatpush1.bf16.xpose.msra.mxu0 0
        %1361 = vmatprep.subr.bf16.mxu0 0
        %1362 = vmatpush1.bf16.xpose.msra.mxu0 0
        %1363 = vmatprep.subr.bf16.mxu0 0
        %1364 = vmatpush1.bf16.xpose.msra.mxu0 0
        %1365 = vmatprep.mubr.bf16.mxu0 0
        %1366 = vmatmul.mubr.bf16.gmra.mrb[0].mxu0 %v1328
        %v1367 = vpop.f32.mrb[0].mxu0
        %v1368 = vadd.f32 0.0, %v1367
        %v1369 = vpop.f32.mrb[0].mxu0
        %v1370 = vpop.f32.mrb[0].mxu0
        %v1371 = vpop.f32.mrb[0].mxu0
        %1372 = vdwg.mxu0
        %v1373 = vsel %vm451, %v1221, -inf
        %1374 = vmax.xlane.f32.xlu0 %v1373
        %v1375 = vpop.xlane.xlu0 %1374
        %v1376 = vsel %vm451, %v1270, -inf
        %1377 = vmax.xlane.f32.xlu0 %v1376
        %v1378 = vpop.xlane.xlu0 %1377
        %v1379 = vsel %vm451, %v1319, -inf
        %1380 = vmax.xlane.f32.xlu0 %v1379
        %v1381 = vpop.xlane.xlu0 %1380
        %v1382 = vsel %vm451, %v1368, -inf
        %1383 = vmax.xlane.f32.xlu0 %v1382
        %v1384 = vpop.xlane.xlu0 %1383
        %v1385 = vsub.f32 %v1221, %v1375
        %v1386 = vsub.f32 %v1270, %v1378
        %v1387 = vsub.f32 %v1319, %v1381
        %v1388 = vsub.f32 %v1368, %v1384
        %v1389 = vmul.f32 %v1385, 1.442695
        %v1390 = vpow.pop %v1389
        %v1391 = vmul.f32 %v1386, 1.442695
        %v1392 = vpow.pop %v1391
        %v1393 = vmul.f32 %v1387, 1.442695
        %v1394 = vpow.pop %v1393
        %v1395 = vmul.f32 %v1388, 1.442695
        %v1396 = vpow.pop %v1395
        %v1397 = vsel %vm451, %v1390, 0.0
        %1398 = vadd.xlane.f32.xlu0 %v1397
        %v1399 = vpop.xlane.xlu0 %1398
        %v1400 = vsel %vm451, %v1392, 0.0
        %1401 = vadd.xlane.f32.xlu0 %v1400
        %v1402 = vpop.xlane.xlu0 %1401
        %v1403 = vsel %vm451, %v1394, 0.0
        %1404 = vadd.xlane.f32.xlu0 %v1403
        %v1405 = vpop.xlane.xlu0 %1404
        %v1406 = vsel %vm451, %v1396, 0.0
        %1407 = vadd.xlane.f32.xlu0 %v1406
        %v1408 = vpop.xlane.xlu0 %1407
        %v1409 = vrcp.pop %v1399
        %v1410 = vmul.f32 %v1390, %v1409
        %v1411 = vrcp.pop %v1402
        %v1412 = vmul.f32 %v1392, %v1411
        %v1413 = vrcp.pop %v1405
        %v1414 = vmul.f32 %v1394, %v1413
        %v1415 = vrcp.pop %v1408
        %v1416 = vmul.f32 %v1396, %v1415
        %v1417 = vpack.c.bf16 %v1410, %v1410
        %v1418 = vpack.c.bf16 %v1412, %v1412
        %v1419 = vpack.c.bf16 %v1414, %v1414
        %v1420 = vpack.c.bf16 %v1416, %v1416
        %1421 = vrot.lane.b32.xlu0 %v1173, 64
        %v1422 = vpop.permute.xlu0 %1421
        %v1424 = vsel %vm451, %v1417, 0
        %v1427 = vsel %vm698, %v1422, 0
        %1429 = vmatprep.subr.bf16.mxu0 0
        %1430 = vmatpush1.bf16.msra.mxu0 %v1427
        %1431 = vmatprep.subr.bf16.mxu0 0
        %1432 = vmatpush1.bf16.msra.mxu0 0
        %1433 = vmatprep.subr.bf16.mxu0 0
        %1434 = vmatpush1.bf16.msra.mxu0 0
        %1435 = vmatprep.subr.bf16.mxu0 0
        %1436 = vmatpush1.bf16.msra.mxu0 0
        %1437 = vmatprep.subr.bf16.mxu0 0
        %1438 = vmatpush1.bf16.msra.mxu0 0
        %1439 = vmatprep.subr.bf16.mxu0 0
        %1440 = vmatpush1.bf16.msra.mxu0 0
        %1441 = vmatprep.subr.bf16.mxu0 0
        %1442 = vmatpush1.bf16.msra.mxu0 0
        %1443 = vmatprep.subr.bf16.mxu0 0
        %1444 = vmatpush1.bf16.msra.mxu0 0
        %1445 = vmatprep.subr.bf16.mxu0 0
        %1446 = vmatpush1.bf16.msra.mxu0 0
        %1447 = vmatprep.subr.bf16.mxu0 0
        %1448 = vmatpush1.bf16.msra.mxu0 0
        %1449 = vmatprep.subr.bf16.mxu0 0
        %1450 = vmatpush1.bf16.msra.mxu0 0
        %1451 = vmatprep.subr.bf16.mxu0 0
        %1452 = vmatpush1.bf16.msra.mxu0 0
        %1453 = vmatprep.subr.bf16.mxu0 0
        %1454 = vmatpush1.bf16.msra.mxu0 0
        %1455 = vmatprep.subr.bf16.mxu0 0
        %1456 = vmatpush1.bf16.msra.mxu0 0
        %1457 = vmatprep.subr.bf16.mxu0 0
        %1458 = vmatpush1.bf16.msra.mxu0 0
        %1459 = vmatprep.subr.bf16.mxu0 0
        %1460 = vmatpush1.bf16.msra.mxu0 0
        %1461 = vmatprep.mubr.bf16.mxu0 0
        %1462 = vmatmul.mubr.bf16.gmra.mrb[0].mxu0 %v1424
        %v1463 = vpop.f32.mrb[0].mxu0
        %v1464 = vadd.f32 0.0, %v1463
        %v1465 = vpop.f32.mrb[0].mxu0
        %v1466 = vpop.f32.mrb[0].mxu0
        %v1467 = vpop.f32.mrb[0].mxu0
        %1468 = vdwg.mxu0
        %1469 = vrot.lane.b32.xlu0 %v1174, 64
        %v1470 = vpop.permute.xlu0 %1469
        %v1472 = vsel %vm451, %v1418, 0
        %v1475 = vsel %vm698, %v1470, 0
        %1477 = vmatprep.subr.bf16.mxu0 0
        %1478 = vmatpush1.bf16.msra.mxu0 %v1475
        %1479 = vmatprep.subr.bf16.mxu0 0
        %1480 = vmatpush1.bf16.msra.mxu0 0
        %1481 = vmatprep.subr.bf16.mxu0 0
        %1482 = vmatpush1.bf16.msra.mxu0 0
        %1483 = vmatprep.subr.bf16.mxu0 0
        %1484 = vmatpush1.bf16.msra.mxu0 0
        %1485 = vmatprep.subr.bf16.mxu0 0
        %1486 = vmatpush1.bf16.msra.mxu0 0
        %1487 = vmatprep.subr.bf16.mxu0 0
        %1488 = vmatpush1.bf16.msra.mxu0 0
        %1489 = vmatprep.subr.bf16.mxu0 0
        %1490 = vmatpush1.bf16.msra.mxu0 0
        %1491 = vmatprep.subr.bf16.mxu0 0
        %1492 = vmatpush1.bf16.msra.mxu0 0
        %1493 = vmatprep.subr.bf16.mxu0 0
        %1494 = vmatpush1.bf16.msra.mxu0 0
        %1495 = vmatprep.subr.bf16.mxu0 0
        %1496 = vmatpush1.bf16.msra.mxu0 0
        %1497 = vmatprep.subr.bf16.mxu0 0
        %1498 = vmatpush1.bf16.msra.mxu0 0
        %1499 = vmatprep.subr.bf16.mxu0 0
        %1500 = vmatpush1.bf16.msra.mxu0 0
        %1501 = vmatprep.subr.bf16.mxu0 0
        %1502 = vmatpush1.bf16.msra.mxu0 0
        %1503 = vmatprep.subr.bf16.mxu0 0
        %1504 = vmatpush1.bf16.msra.mxu0 0
        %1505 = vmatprep.subr.bf16.mxu0 0
        %1506 = vmatpush1.bf16.msra.mxu0 0
        %1507 = vmatprep.subr.bf16.mxu0 0
        %1508 = vmatpush1.bf16.msra.mxu0 0
        %1509 = vmatprep.mubr.bf16.mxu0 0
        %1510 = vmatmul.mubr.bf16.gmra.mrb[0].mxu0 %v1472
        %v1511 = vpop.f32.mrb[0].mxu0
        %v1512 = vadd.f32 0.0, %v1511
        %v1513 = vpop.f32.mrb[0].mxu0
        %v1514 = vpop.f32.mrb[0].mxu0
        %v1515 = vpop.f32.mrb[0].mxu0
        %1516 = vdwg.mxu0
        %1517 = vrot.lane.b32.xlu0 %v1175, 64
        %v1518 = vpop.permute.xlu0 %1517
        %v1520 = vsel %vm451, %v1419, 0
        %v1523 = vsel %vm698, %v1518, 0
        %1525 = vmatprep.subr.bf16.mxu0 0
        %1526 = vmatpush1.bf16.msra.mxu0 %v1523
        %1527 = vmatprep.subr.bf16.mxu0 0
        %1528 = vmatpush1.bf16.msra.mxu0 0
        %1529 = vmatprep.subr.bf16.mxu0 0
        %1530 = vmatpush1.bf16.msra.mxu0 0
        %1531 = vmatprep.subr.bf16.mxu0 0
        %1532 = vmatpush1.bf16.msra.mxu0 0
        %1533 = vmatprep.subr.bf16.mxu0 0
        %1534 = vmatpush1.bf16.msra.mxu0 0
        %1535 = vmatprep.subr.bf16.mxu0 0
        %1536 = vmatpush1.bf16.msra.mxu0 0
        %1537 = vmatprep.subr.bf16.mxu0 0
        %1538 = vmatpush1.bf16.msra.mxu0 0
        %1539 = vmatprep.subr.bf16.mxu0 0
        %1540 = vmatpush1.bf16.msra.mxu0 0
        %1541 = vmatprep.subr.bf16.mxu0 0
        %1542 = vmatpush1.bf16.msra.mxu0 0
        %1543 = vmatprep.subr.bf16.mxu0 0
        %1544 = vmatpush1.bf16.msra.mxu0 0
        %1545 = vmatprep.subr.bf16.mxu0 0
        %1546 = vmatpush1.bf16.msra.mxu0 0
        %1547 = vmatprep.subr.bf16.mxu0 0
        %1548 = vmatpush1.bf16.msra.mxu0 0
        %1549 = vmatprep.subr.bf16.mxu0 0
        %1550 = vmatpush1.bf16.msra.mxu0 0
        %1551 = vmatprep.subr.bf16.mxu0 0
        %1552 = vmatpush1.bf16.msra.mxu0 0
        %1553 = vmatprep.subr.bf16.mxu0 0
        %1554 = vmatpush1.bf16.msra.mxu0 0
        %1555 = vmatprep.subr.bf16.mxu0 0
        %1556 = vmatpush1.bf16.msra.mxu0 0
        %1557 = vmatprep.mubr.bf16.mxu0 0
        %1558 = vmatmul.mubr.bf16.gmra.mrb[0].mxu0 %v1520
        %v1559 = vpop.f32.mrb[0].mxu0
        %v1560 = vadd.f32 0.0, %v1559
        %v1561 = vpop.f32.mrb[0].mxu0
        %v1562 = vpop.f32.mrb[0].mxu0
        %v1563 = vpop.f32.mrb[0].mxu0
        %1564 = vdwg.mxu0
        %1565 = vrot.lane.b32.xlu0 %v1176, 64
        %v1566 = vpop.permute.xlu0 %1565
        %v1568 = vsel %vm451, %v1420, 0
        %v1571 = vsel %vm698, %v1566, 0
        %1573 = vmatprep.subr.bf16.mxu0 0
        %1574 = vmatpush1.bf16.msra.mxu0 %v1571
        %1575 = vmatprep.subr.bf16.mxu0 0
        %1576 = vmatpush1.bf16.msra.mxu0 0
        %1577 = vmatprep.subr.bf16.mxu0 0
        %1578 = vmatpush1.bf16.msra.mxu0 0
        %1579 = vmatprep.subr.bf16.mxu0 0
        %1580 = vmatpush1.bf16.msra.mxu0 0
        %1581 = vmatprep.subr.bf16.mxu0 0
        %1582 = vmatpush1.bf16.msra.mxu0 0
        %1583 = vmatprep.subr.bf16.mxu0 0
        %1584 = vmatpush1.bf16.msra.mxu0 0
        %1585 = vmatprep.subr.bf16.mxu0 0
        %1586 = vmatpush1.bf16.msra.mxu0 0
        %1587 = vmatprep.subr.bf16.mxu0 0
        %1588 = vmatpush1.bf16.msra.mxu0 0
        %1589 = vmatprep.subr.bf16.mxu0 0
        %1590 = vmatpush1.bf16.msra.mxu0 0
        %1591 = vmatprep.subr.bf16.mxu0 0
        %1592 = vmatpush1.bf16.msra.mxu0 0
        %1593 = vmatprep.subr.bf16.mxu0 0
        %1594 = vmatpush1.bf16.msra.mxu0 0
        %1595 = vmatprep.subr.bf16.mxu0 0
        %1596 = vmatpush1.bf16.msra.mxu0 0
        %1597 = vmatprep.subr.bf16.mxu0 0
        %1598 = vmatpush1.bf16.msra.mxu0 0
        %1599 = vmatprep.subr.bf16.mxu0 0
        %1600 = vmatpush1.bf16.msra.mxu0 0
        %1601 = vmatprep.subr.bf16.mxu0 0
        %1602 = vmatpush1.bf16.msra.mxu0 0
        %1603 = vmatprep.subr.bf16.mxu0 0
        %1604 = vmatpush1.bf16.msra.mxu0 0
        %1605 = vmatprep.mubr.bf16.mxu0 0
        %1606 = vmatmul.mubr.bf16.gmra.mrb[0].mxu0 %v1568
        %v1607 = vpop.f32.mrb[0].mxu0
        %v1608 = vadd.f32 0.0, %v1607
        %v1609 = vpop.f32.mrb[0].mxu0
        %v1610 = vpop.f32.mrb[0].mxu0
        %v1611 = vpop.f32.mrb[0].mxu0
        %1612 = vdwg.mxu0
        %1614 = vrot.lane.b32.xlu0 %v1512, 8
        %v1615 = vpop.permute.xlu0 %1614
        %1618 = vrot.lane.b32.xlu0 %v1560, 16
        %v1619 = vpop.permute.xlu0 %1618
        %1622 = vrot.lane.b32.xlu0 %v1608, 24
        %v1623 = vpop.permute.xlu0 %1622
        %v1625 = vsel %vm451, %v1464, %v1615
        %v1626 = vsel %vm899, %v1625, %v1619
        %v1627 = vsel %vm901, %v1626, %v1623
        %v1628 = vpack.c.bf16 %v1627, %v1627
        %v1630 = vsel %vm390, %v1628, 0
        %1632 = vmatprep.subr.bf16.mxu0 0
        %1633 = vmatpush1.bf16.msra.mxu0 %v912
        %1634 = vmatprep.subr.bf16.mxu0 0
        %1635 = vmatpush1.bf16.msra.mxu0 %v913
        %1636 = vmatprep.subr.bf16.mxu0 0
        %1637 = vmatpush1.bf16.msra.mxu0 0
        %1638 = vmatprep.subr.bf16.mxu0 0
        %1639 = vmatpush1.bf16.msra.mxu0 0
        %1640 = vmatprep.subr.bf16.mxu0 0
        %1641 = vmatpush1.bf16.msra.mxu0 0
        %1642 = vmatprep.subr.bf16.mxu0 0
        %1643 = vmatpush1.bf16.msra.mxu0 0
        %1644 = vmatprep.subr.bf16.mxu0 0
        %1645 = vmatpush1.bf16.msra.mxu0 0
        %1646 = vmatprep.subr.bf16.mxu0 0
        %1647 = vmatpush1.bf16.msra.mxu0 0
        %1648 = vmatprep.subr.bf16.mxu0 0
        %1649 = vmatpush1.bf16.msra.mxu0 0
        %1650 = vmatprep.subr.bf16.mxu0 0
        %1651 = vmatpush1.bf16.msra.mxu0 0
        %1652 = vmatprep.subr.bf16.mxu0 0
        %1653 = vmatpush1.bf16.msra.mxu0 0
        %1654 = vmatprep.subr.bf16.mxu0 0
        %1655 = vmatpush1.bf16.msra.mxu0 0
        %1656 = vmatprep.subr.bf16.mxu0 0
        %1657 = vmatpush1.bf16.msra.mxu0 0
        %1658 = vmatprep.subr.bf16.mxu0 0
        %1659 = vmatpush1.bf16.msra.mxu0 0
        %1660 = vmatprep.subr.bf16.mxu0 0
        %1661 = vmatpush1.bf16.msra.mxu0 0
        %1662 = vmatprep.subr.bf16.mxu0 0
        %1663 = vmatpush1.bf16.msra.mxu0 0
        %1664 = vmatprep.mubr.bf16.mxu0 0
        %1665 = vmatmul.mubr.bf16.gmra.mrb[0].mxu0 %v1630
        %v1666 = vpop.f32.mrb[0].mxu0
        %v1667 = vadd.f32 %v355, %v1666
        %v1668 = vpop.f32.mrb[0].mxu0
        %v1669 = vpop.f32.mrb[0].mxu0
        %v1670 = vpop.f32.mrb[0].mxu0
        %1671 = vdwg.mxu0
        %v1672 = vadd.f32 %v1118, %v1667
        %v1673 = vsel %vm390, %v1672, 0.0
        %1674 = vadd.xlane.f32.xlu0 %v1673
        %v1675 = vpop.xlane.xlu0 %1674
        %v1676 = vmul.f32 %v1675, %v963
        %v1677 = vsub.f32 %v1672, %v1676
        %v1678 = vmul.f32 %v1677, %v1677
        %v1679 = vsel %vm390, %v1678, 0.0
        %1680 = vadd.xlane.f32.xlu0 %v1679
        %v1681 = vpop.xlane.xlu0 %1680
        %v1682 = vmul.f32 %v1681, %v963
        %v1683 = vadd.f32 %v1682, 1e-05
        %v1684 = vrsqrt.pop %v1683
        %v1685 = vmul.f32 %v1677, %v1684
        %v1686 = vmul.f32 %v1685, %v359
        %v1687 = vadd.f32 %v1686, %v363
        %v1688 = vpack.c.bf16 %v1687, %v1687
        %v1690 = vsel %vm390, %v1688, 0
        %1692 = vmatprep.subr.bf16.mxu0 0
        %1693 = vmatpush1.bf16.msra.mxu0 %v985
        %1694 = vmatprep.subr.bf16.mxu0 0
        %1695 = vmatpush1.bf16.msra.mxu0 %v986
        %1696 = vmatprep.subr.bf16.mxu0 0
        %1697 = vmatpush1.bf16.msra.mxu0 0
        %1698 = vmatprep.subr.bf16.mxu0 0
        %1699 = vmatpush1.bf16.msra.mxu0 0
        %1700 = vmatprep.subr.bf16.mxu0 0
        %1701 = vmatpush1.bf16.msra.mxu0 0
        %1702 = vmatprep.subr.bf16.mxu0 0
        %1703 = vmatpush1.bf16.msra.mxu0 0
        %1704 = vmatprep.subr.bf16.mxu0 0
        %1705 = vmatpush1.bf16.msra.mxu0 0
        %1706 = vmatprep.subr.bf16.mxu0 0
        %1707 = vmatpush1.bf16.msra.mxu0 0
        %1708 = vmatprep.subr.bf16.mxu0 0
        %1709 = vmatpush1.bf16.msra.mxu0 0
        %1710 = vmatprep.subr.bf16.mxu0 0
        %1711 = vmatpush1.bf16.msra.mxu0 0
        %1712 = vmatprep.subr.bf16.mxu0 0
        %1713 = vmatpush1.bf16.msra.mxu0 0
        %1714 = vmatprep.subr.bf16.mxu0 0
        %1715 = vmatpush1.bf16.msra.mxu0 0
        %1716 = vmatprep.subr.bf16.mxu0 0
        %1717 = vmatpush1.bf16.msra.mxu0 0
        %1718 = vmatprep.subr.bf16.mxu0 0
        %1719 = vmatpush1.bf16.msra.mxu0 0
        %1720 = vmatprep.subr.bf16.mxu0 0
        %1721 = vmatpush1.bf16.msra.mxu0 0
        %1722 = vmatprep.subr.bf16.mxu0 0
        %1723 = vmatpush1.bf16.msra.mxu0 0
        %1724 = vmatprep.mubr.bf16.mxu0 0
        %1725 = vmatmul.mubr.bf16.gmra.mrb[0].mxu0 %v1690
        %v1726 = vpop.f32.mrb[0].mxu0
        %v1727 = vadd.f32 %v349, %v1726
        %v1728 = vpop.f32.mrb[0].mxu0
        %v1729 = vpop.f32.mrb[0].mxu0
        %v1730 = vpop.f32.mrb[0].mxu0
        %1731 = vdwg.mxu0
        %v1732 = vmax.f32 %v1727, 0.0
        %v1733 = vpack.c.bf16 %v1732, %v1732
        %v1735 = vsel %vm1058, %v1733, 0
        %1737 = vmatprep.subr.bf16.mxu0 0
        %1738 = vmatpush1.bf16.msra.mxu0 %v1050
        %1739 = vmatprep.subr.bf16.mxu0 0
        %1740 = vmatpush1.bf16.msra.mxu0 %v1051
        %1741 = vmatprep.subr.bf16.mxu0 0
        %1742 = vmatpush1.bf16.msra.mxu0 %v1052
        %1743 = vmatprep.subr.bf16.mxu0 0
        %1744 = vmatpush1.bf16.msra.mxu0 %v1053
        %1745 = vmatprep.subr.bf16.mxu0 0
        %1746 = vmatpush1.bf16.msra.mxu0 0
        %1747 = vmatprep.subr.bf16.mxu0 0
        %1748 = vmatpush1.bf16.msra.mxu0 0
        %1749 = vmatprep.subr.bf16.mxu0 0
        %1750 = vmatpush1.bf16.msra.mxu0 0
        %1751 = vmatprep.subr.bf16.mxu0 0
        %1752 = vmatpush1.bf16.msra.mxu0 0
        %1753 = vmatprep.subr.bf16.mxu0 0
        %1754 = vmatpush1.bf16.msra.mxu0 0
        %1755 = vmatprep.subr.bf16.mxu0 0
        %1756 = vmatpush1.bf16.msra.mxu0 0
        %1757 = vmatprep.subr.bf16.mxu0 0
        %1758 = vmatpush1.bf16.msra.mxu0 0
        %1759 = vmatprep.subr.bf16.mxu0 0
        %1760 = vmatpush1.bf16.msra.mxu0 0
        %1761 = vmatprep.subr.bf16.mxu0 0
        %1762 = vmatpush1.bf16.msra.mxu0 0
        %1763 = vmatprep.subr.bf16.mxu0 0
        %1764 = vmatpush1.bf16.msra.mxu0 0
        %1765 = vmatprep.subr.bf16.mxu0 0
        %1766 = vmatpush1.bf16.msra.mxu0 0
        %1767 = vmatprep.subr.bf16.mxu0 0
        %1768 = vmatpush1.bf16.msra.mxu0 0
        %1769 = vmatprep.mubr.bf16.mxu0 0
        %1770 = vmatmul.mubr.bf16.gmra.mrb[0].mxu0 %v1735
        %v1771 = vpop.f32.mrb[0].mxu0
        %v1772 = vadd.f32 %v367, %v1771
        %v1773 = vpop.f32.mrb[0].mxu0
        %v1774 = vpop.f32.mrb[0].mxu0
        %v1775 = vpop.f32.mrb[0].mxu0
        %1776 = vdwg.mxu0
        %v1777 = vadd.f32 %v1687, %v1772
        %v1778 = vsel %vm390, %v1777, 0.0
        %1779 = vadd.xlane.f32.xlu0 %v1778
        %v1780 = vpop.xlane.xlu0 %1779
        %v1781 = vmul.f32 %v1780, %v963
        %v1782 = vsub.f32 %v1777, %v1781
        %v1783 = vmul.f32 %v1782, %v1782
        %v1784 = vsel %vm390, %v1783, 0.0
        %1785 = vadd.xlane.f32.xlu0 %v1784
        %v1786 = vpop.xlane.xlu0 %1785
        %v1787 = vmul.f32 %v1786, %v963
        %v1788 = vadd.f32 %v1787, 1e-05
        %v1789 = vrsqrt.pop %v1788
        %v1790 = vmul.f32 %v1782, %v1789
        %v1791 = vmul.f32 %v1790, %v371
        %v1792 = vadd.f32 %v1791, %v375
        %v1793 = vadd.f32 %v1118, %v1792
        %1794 = vst.msk [vmem:[%s311] sm:$0xff] %vm390, %v1793
        %s1795 = sand.u32 %s204, 1
        %s1796 = scalar_lea.sflag [#allocation4], %s1795
        %s1797 = sand.u32 %s204, 1
        %s1798 = smul.addr %s1797, 8
        %s1799 = scalar_lea.vmem [#allocation5], %s1798
        // Predicated region
        $region57: #{tpu_custom_call.1} parent=51 // pred_check
          %p1800 = pneg %p214
        $region58: #{tpu_custom_call.1} parent=51 // pred_check_branch
          %1802 = sbr.rel (%p1800) target = $region60
        $region59: #{tpu_custom_call.1} parent=51 // pred_region
          %s1804 = ssub.s32 128, 128
          %1805 = vsyncadd %s1796, %s1804
          %s1806 = smul.addr %s23, 128
          %s1807 = scalar_lea.hbm %s8, %s1806
          %s1809 = sshll.u32 %s1799, 4
          %s1810 = int_to_ptr.vmem [resolvable:$true] %s1809
          %1812 = dma.vmem_to_hbm [thread:$0]  %s1810, 128, %s1807, %s1796
        $region60: #{tpu_custom_call.1} parent=51 // pred_fallthru
          _
      $region52: #{tpu_custom_call.1} parent=5 // pred_fallthru
        _
      %p1813 = scmp.le.s32.totalorder 2, %s18
      // Predicated region
      $region61: #{tpu_custom_call.1} parent=5 // pred_check
        %p1814 = pneg %p1813
      $region62: #{tpu_custom_call.1} parent=5 // pred_check_branch
        %1816 = sbr.rel (%p1814) target = $region64
      $region63: #{tpu_custom_call.1} parent=5 // pred_region
        %s1817 = ssub.s32 %s18, 2
        // Predicated region
        $region65: #{tpu_custom_call.1} parent=63 // pred_check
          %p1818 = pneg %p220
        $region66: #{tpu_custom_call.1} parent=63 // pred_check_branch
          %1820 = sbr.rel (%p1818) target = $region68
        $region67: #{tpu_custom_call.1} parent=63 // pred_region
          %s1821 = sand.u32 %s205, 1
          %s1822 = scalar_lea.sflag [#allocation4], %s1821
          %s1823 = sand.u32 %s205, 1
          %s1824 = smul.addr %s1823, 8
          %s1825 = scalar_lea.vmem [#allocation5], %s1824
          %1826 = dma.done %s1822, 128
        $region68: #{tpu_custom_call.1} parent=63 // pred_fallthru
          _
      $region64: #{tpu_custom_call.1} parent=5 // pred_fallthru
        _
    $region6: #{tpu_custom_call.1} parent=1 // loop_footer
      %s22 = sadd.s32 1, %s18
    $region7: #{tpu_custom_call.1} parent=1 // loop_footer_branch
      %17 = sbr.rel target = $region3
    $region8: #{tpu_custom_call.1} parent=1 // loop_exit
      _
    %1827 = vsyncpa [#allocation3], 1
    %s1828 = scalar_lea.sflag [#allocation3], 1
    %1829 = vsyncpa %s1828, 1
    %1830 = vsyncpa [#allocation4], 1
    %s1831 = scalar_lea.sflag [#allocation4], 1
    %1832 = vsyncpa %s1831, 1

</llo_original>
